<compile_context>
chip_gen: v7x
topology: tpu7x:2x2x1
jax: 0.10.0
libtpu: 0.0.40
codegen_flags: <defaults>
</compile_context>

<pallas_src>
import jax
import jax.numpy as jnp
from jax import lax
from jax.experimental import pallas as pl
from jax.experimental.pallas import tpu as pltpu

TOL = 1e-7


# ---------------------------------------------------------------------------
# Helpers
# ---------------------------------------------------------------------------
def _clamp_tol(v, tol):
    # PyTorch semantics: if |v| < tol: v = tol   (note: +tol even if v < 0)
    return jnp.where(jnp.abs(v) < tol, jnp.float32(tol), v)


def _pick_block_n(N, C, L, cap_bytes=2 << 20, cap_n=8):
    """Largest divisor of N (<= cap_n) whose (nb, C, L) f32 block fits the cap.

    In+out double buffering makes the real VMEM footprint ~4x this, still well
    under the 32 MiB scoped default at cap_bytes = 2 MiB.
    """
    for cand in range(min(N, cap_n), 0, -1):
        if N % cand == 0 and cand * C * L * 4 <= cap_bytes:
            return cand
    return 1


# ---------------------------------------------------------------------------
# Pure-JAX reference (XLA conv) — correctness oracle + L<3 fallback
# ---------------------------------------------------------------------------
def _layer_ref(v, w, b):
    out = lax.conv_general_dilated(
        v, w, window_strides=(1,), padding=((1, 1),),
        dimension_numbers=("NCH", "OIH", "NCH"),
        precision=lax.Precision.HIGHEST)
    return out + b.reshape(1, -1, 1)


def gauss_elimination_ref(x, w, b, left, right, tol=TOL):
    layer = lambda v: _layer_ref(v, w, b)
    e1 = jnp.zeros_like(x).at[:, :, 0].set(1.0)
    eN = jnp.zeros_like(x).at[:, :, -1].set(1.0)
    K00 = _clamp_tol(layer(e1)[0, 0, 0], tol)
    KN0 = layer(e1)[0, 0, -1]
    KNN = _clamp_tol(layer(eN)[0, 0, -1], tol)
    K0N = layer(eN)[0, 0, 0]
    if left is not None:
        Kx = layer(x)
        tilde_K00 = _clamp_tol(K00 - KN0 * K0N / KNN, tol)
        new0 = (2.0 * x[:, :, 0]
                - 1.0 / tilde_K00 * (Kx[:, :, 0]
                                     - Kx[:, :, -1] * K0N / KNN
                                     + K0N * x[:, :, -1]))
        T2_left = x.at[:, :, 0].set(new0)
    else:
        T2_left = x
    Ky = layer(T2_left)
    if right is not None:
        newN = 2.0 * T2_left[:, :, -1] - Ky[:, :, -1] / KNN
        T2_right = T2_left.at[:, :, -1].set(newN)
    else:
        T2_right = T2_left
    return layer(T2_right)


# ---------------------------------------------------------------------------
# Fused Pallas kernel: conv + left correction + right correction + final conv
# ---------------------------------------------------------------------------
def _make_fused_kernel(nb, apply_left, apply_right):
    """Kernel for a (nb, C, L) batch block.  Scalars live in SMEM:
       s_ref = [1/tilde_K00, K0N/KNN, K0N, 1/KNN]."""

    def kernel(s_ref, x_ref, w_ref, b_ref, o_ref):
        C = x_ref.shape[1]
        L = x_ref.shape[2]
        w0 = w_ref[0]                          # tap for x[:, j-1]
        w1 = w_ref[1]                          # tap for x[:, j]
        w2 = w_ref[2]                          # tap for x[:, j+1]
        bias = b_ref[...]                      # (C, 1), broadcasts over lanes
        inv_tilde = s_ref[0]
        k0n_over_knn = s_ref[1]
        k0n = s_ref[2]
        inv_knn = s_ref[3]

        col = lax.broadcasted_iota(jnp.int32, (C, L), 1)   # hoisted out of loop

        # In-kernel halo via pltpu.roll.  Derive the rotate-direction
        # convention once from a rolled iota (uniform predicate, no data
        # dependence) so the tap assignment is robust either way.
        rolled_iota = pltpu.roll(col, 1, axis=1)
        expect_fwd = jnp.where(col == 0, L - 1, col - 1)
        is_fwd = rolled_iota == expect_fwd      # True iff roll == jnp.roll

        for n in range(nb):                     # static unroll, nb <= 8
            x = x_ref[n]                        # (C, L)

            # ---- layer(x): three shifted-tap MXU matmuls, zero halo.
            r_a = pltpu.roll(x, 1, axis=1)
            r_b = pltpu.roll(x, L - 1, axis=1)
            x_lft = jnp.where(col == 0, 0.0, jnp.where(is_fwd, r_a, r_b))
            x_rgt = jnp.where(col == L - 1, 0.0, jnp.where(is_fwd, r_b, r_a))
            kx = jnp.dot(w0, x_lft, preferred_element_type=jnp.float32)
            kx = kx + jnp.dot(w1, x, preferred_element_type=jnp.float32)
            kx = kx + jnp.dot(w2, x_rgt, preferred_element_type=jnp.float32)
            kx = kx + bias

            x0, xN = x[:, 0:1], x[:, L - 1:L]
            kx0, kxN = kx[:, 0:1], kx[:, L - 1:L]

            # ---- Gaussian-elimination boundary deltas.
            if apply_left:
                new0 = 2.0 * x0 - inv_tilde * (
                    kx0 - kxN * k0n_over_knn + k0n * xN)
                d0 = new0 - x0
            else:
                d0 = jnp.zeros_like(x0)
            if apply_right:
                # layer(T2_left)[:, L-1] == Kx[:, L-1] for L >= 3.
                newN = 2.0 * xN - kxN * inv_knn
                dN = newN - xN
            else:
                dN = jnp.zeros_like(xN)

            # ---- T = layer(T2_right) = Kx + conv of the two boundary deltas;
            # only output columns {0, 1, L-2, L-1} change.
            c0 = kx0 + jnp.dot(w1, d0, preferred_element_type=jnp.float32)
            cN = kxN + jnp.dot(w1, dN, preferred_element_type=jnp.float32)
            p1 = jnp.dot(w0, d0, preferred_element_type=jnp.float32)
            pN1 = jnp.dot(w2, dN, preferred_element_type=jnp.float32)

            out = jnp.where(col == 0, jnp.broadcast_to(c0, (C, L)), kx)
            out = jnp.where(col == L - 1, jnp.broadcast_to(cN, (C, L)), out)
            if L >= 4:
                out = jnp.where(
                    col == 1, jnp.broadcast_to(kx[:, 1:2] + p1, (C, L)), out)
                out = jnp.where(
                    col == L - 2,
                    jnp.broadcast_to(kx[:, L - 2:L - 1] + pN1, (C, L)), out)
            else:  # L == 3: output columns 1 and L-2 coincide.
                out = jnp.where(
                    col == 1,
                    jnp.broadcast_to(kx[:, 1:2] + p1 + pN1, (C, L)), out)

            o_ref[n] = out                      # single lane-dense store

    return kernel


# ---------------------------------------------------------------------------
# gaussian_elim_layer1d.gauss_elimination forward semantics
# ---------------------------------------------------------------------------
def gauss_elimination_pallas(x, w, b, left, right, tol=TOL):
    """x: (N, C, L); w: (C, C, 3) Conv1d weight (PyTorch layout); b: (C,).

    `left` / `right` only matter via their None-ness, as in the PyTorch code.
    """
    N, C, L = x.shape
    x = x.astype(jnp.float32)
    w = w.astype(jnp.float32)
    b = b.astype(jnp.float32)

    if L < 3:
        # TODO(synk): degenerate lengths (L < 3) fall back to the XLA
        # reference — the fused-kernel identities below require L >= 3.
        return gauss_elimination_ref(x, w, b, left, right, tol)

    w_stack = jnp.transpose(w, (2, 0, 1))       # (3, Cout, Cin)
    b_col = b.reshape(C, 1)

    # Analytic boundary probes (valid for L >= 3):
    #   layer(e1)[0,0,0]  = layer(eN)[0,0,-1] = sum_cin w[0,cin,1] + b[0]
    #   layer(e1)[0,0,-1] = layer(eN)[0,0,0]  = b[0]
    center = jnp.sum(w[0, :, 1]) + b[0]
    K00 = _clamp_tol(center, tol)
    KNN = _clamp_tol(center, tol)
    KN0 = b[0]
    K0N = b[0]
    tilde_K00 = _clamp_tol(K00 - KN0 * K0N / KNN, tol)
    scal = jnp.stack(
        [1.0 / tilde_K00, K0N / KNN, K0N, 1.0 / KNN]).astype(jnp.float32)

    nb = _pick_block_n(N, C, L)
    kernel = _make_fused_kernel(nb, left is not None, right is not None)

    return pl.pallas_call(
        kernel,
        out_shape=jax.ShapeDtypeStruct((N, C, L), jnp.float32),
        grid=(N // nb,),
        in_specs=[
            pl.BlockSpec(memory_space=pltpu.MemorySpace.SMEM),   # 4 f32 scalars
            pl.BlockSpec((nb, C, L), lambda i: (i, 0, 0)),
            pl.BlockSpec((3, C, C), lambda i: (0, 0, 0)),
            pl.BlockSpec((C, 1), lambda i: (0, 0)),
        ],
        out_specs=pl.BlockSpec((nb, C, L), lambda i: (i, 0, 0)),
        compiler_params=pltpu.CompilerParams(
            dimension_semantics=("parallel",)),
    )(scal, x, w_stack, b_col)
    # TODO(synk): for very long L add L-tiling with a 1-column halo exchange;
    # currently each grid step keeps the full (nb, C, L) in/out blocks in VMEM.


# ---------------------------------------------------------------------------
# Driver
# ---------------------------------------------------------------------------
if __name__ == "__main__":
    key = jax.random.PRNGKey(0)
    k_x, k_w, k_b = jax.random.split(key, 3)

    # Small shapes; L is lane-dense (multiple of 128).
    N, C, L = 4, 8, 256
    x = jax.random.normal(k_x, (N, C, L), jnp.float32)

    # Synthetic Conv1d(C, C, kernel=3, padding=1) parameters.  The center tap
    # gets a positive offset so K00 / KNN / tilde_K00 are well conditioned.
    w = 0.1 * jax.random.normal(k_w, (C, C, 3), jnp.float32)
    w = w.at[:, :, 1].add(0.2)
    b = 0.1 * jax.random.normal(k_b, (C,), jnp.float32)

    # Full Gaussian-elimination forward (both boundary corrections active).
    run = jax.jit(lambda xx: gauss_elimination_pallas(
        xx, w, b, left=1.0, right=-1.0, tol=TOL))
    out = jax.block_until_ready(run(x))

    out_ref = gauss_elimination_ref(x, w, b, left=1.0, right=-1.0, tol=TOL)
    assert out.shape == (N, C, L)
    assert bool(jnp.all(jnp.isfinite(out)))
    assert jnp.allclose(out, out_ref, atol=1e-4, rtol=1e-4), "gauss mismatch"

    print("KERNEL_OK")
</pallas_src>

<mosaic_0001>
module attributes {stable_mosaic.version = 11 : i64} {
  func.func @kernel(%arg0: i32, %arg1: memref<4xf32, #tpu.memory_space<smem>>, %arg2: memref<4x8x256xf32, #tpu.memory_space<vmem>>, %arg3: memref<3x8x8xf32, #tpu.memory_space<vmem>>, %arg4: memref<8x1xf32, #tpu.memory_space<vmem>>, %arg5: memref<4x8x256xf32, #tpu.memory_space<vmem>>) attributes {dimension_semantics = [#tpu.dimension_semantics<parallel>], iteration_bounds = array<i64: 1>, scalar_prefetch = 0 : i64, scratch_operands = 0 : i64, tpu.core_type = #tpu.core_type<tc>, window_params = [{transform_indices = @transform_0, window_bounds = array<i64: 4>}, {transform_indices = @transform_1, window_bounds = array<i64: 4, 8, 256>}, {pipeline_mode = #tpu.pipeline_mode<synchronous>, transform_indices = @transform_2, window_bounds = array<i64: 3, 8, 8>}, {pipeline_mode = #tpu.pipeline_mode<synchronous>, transform_indices = @transform_3, window_bounds = array<i64: 8, 1>}, {transform_indices = @transform_4, window_bounds = array<i64: 4, 8, 256>}]} {
    %c0 = arith.constant 0 : index
    %c0_0 = arith.constant 0 : index
    %c0_1 = arith.constant 0 : index
    %0 = vector.load %arg3[%c0, %c0_0, %c0_1] : memref<3x8x8xf32, #tpu.memory_space<vmem>>, vector<1x8x8xf32>
    %1 = vector.shape_cast %0 : vector<1x8x8xf32> to vector<8x8xf32>
    %c1 = arith.constant 1 : index
    %c0_2 = arith.constant 0 : index
    %c0_3 = arith.constant 0 : index
    %2 = vector.load %arg3[%c1, %c0_2, %c0_3] : memref<3x8x8xf32, #tpu.memory_space<vmem>>, vector<1x8x8xf32>
    %3 = vector.shape_cast %2 : vector<1x8x8xf32> to vector<8x8xf32>
    %c2 = arith.constant 2 : index
    %c0_4 = arith.constant 0 : index
    %c0_5 = arith.constant 0 : index
    %4 = vector.load %arg3[%c2, %c0_4, %c0_5] : memref<3x8x8xf32, #tpu.memory_space<vmem>>, vector<1x8x8xf32>
    %5 = vector.shape_cast %4 : vector<1x8x8xf32> to vector<8x8xf32>
    %c0_6 = arith.constant 0 : index
    %c0_7 = arith.constant 0 : index
    %6 = vector.load %arg4[%c0_6, %c0_7] : memref<8x1xf32, #tpu.memory_space<vmem>>, vector<8x1xf32>
    %c0_8 = arith.constant 0 : index
    %7 = memref.load %arg1[%c0_8] : memref<4xf32, #tpu.memory_space<smem>>
    %c1_9 = arith.constant 1 : index
    %8 = memref.load %arg1[%c1_9] : memref<4xf32, #tpu.memory_space<smem>>
    %c2_10 = arith.constant 2 : index
    %9 = memref.load %arg1[%c2_10] : memref<4xf32, #tpu.memory_space<smem>>
    %c3 = arith.constant 3 : index
    %10 = memref.load %arg1[%c3] : memref<4xf32, #tpu.memory_space<smem>>
    %11 = tpu.iota {dimensions = array<i32: 1>} : vector<8x256xi32>
    %c1_i32 = arith.constant 1 : i32
    %12 = tpu.dynamic_rotate %11 by %c1_i32 dim 1 : vector<8x256xi32>, i32 -> vector<8x256xi32>
    %c0_i32 = arith.constant 0 : i32
    %13 = vector.broadcast %c0_i32 : i32 to vector<8x256xi32>
    %14 = arith.cmpi eq, %11, %13 : vector<8x256xi32>
    %c1_i32_11 = arith.constant 1 : i32
    %15 = vector.broadcast %c1_i32_11 : i32 to vector<8x256xi32>
    %16 = arith.subi %11, %15 : vector<8x256xi32>
    %c255_i32 = arith.constant 255 : i32
    %17 = vector.broadcast %c255_i32 : i32 to vector<8x256xi32>
    %18 = arith.select %14, %17, %16 : vector<8x256xi1>, vector<8x256xi32>
    %19 = arith.cmpi eq, %12, %18 : vector<8x256xi32>
    %c0_12 = arith.constant 0 : index
    %c0_13 = arith.constant 0 : index
    %c0_14 = arith.constant 0 : index
    %20 = vector.load %arg2[%c0_12, %c0_13, %c0_14] : memref<4x8x256xf32, #tpu.memory_space<vmem>>, vector<1x8x256xf32>
    %21 = vector.shape_cast %20 : vector<1x8x256xf32> to vector<8x256xf32>
    %c1_i32_15 = arith.constant 1 : i32
    %22 = tpu.dynamic_rotate %21 by %c1_i32_15 dim 1 : vector<8x256xf32>, i32 -> vector<8x256xf32>
    %c255_i32_16 = arith.constant 255 : i32
    %23 = tpu.dynamic_rotate %21 by %c255_i32_16 dim 1 : vector<8x256xf32>, i32 -> vector<8x256xf32>
    %c0_i32_17 = arith.constant 0 : i32
    %24 = vector.broadcast %c0_i32_17 : i32 to vector<8x256xi32>
    %25 = arith.cmpi eq, %11, %24 : vector<8x256xi32>
    %26 = arith.select %19, %22, %23 : vector<8x256xi1>, vector<8x256xf32>
    %cst = arith.constant 0.000000e+00 : f32
    %27 = vector.broadcast %cst : f32 to vector<8x256xf32>
    %28 = arith.select %25, %27, %26 : vector<8x256xi1>, vector<8x256xf32>
    %c255_i32_18 = arith.constant 255 : i32
    %29 = vector.broadcast %c255_i32_18 : i32 to vector<8x256xi32>
    %30 = arith.cmpi eq, %11, %29 : vector<8x256xi32>
    %31 = arith.select %19, %23, %22 : vector<8x256xi1>, vector<8x256xf32>
    %cst_19 = arith.constant 0.000000e+00 : f32
    %32 = vector.broadcast %cst_19 : f32 to vector<8x256xf32>
    %33 = arith.select %30, %32, %31 : vector<8x256xi1>, vector<8x256xf32>
    %cst_20 = arith.constant dense<0.000000e+00> : vector<8x256xf32>
    %34 = tpu.matmul %1, %28, %cst_20 {dimension_numbers = #tpu.dot_dimension_numbers<[1], [0], [0], [1], [0, 0, 1, 1], [], []>} : vector<8x8xf32>, vector<8x256xf32>, vector<8x256xf32> -> vector<8x256xf32>
    %cst_21 = arith.constant dense<0.000000e+00> : vector<8x256xf32>
    %35 = tpu.matmul %3, %21, %cst_21 {dimension_numbers = #tpu.dot_dimension_numbers<[1], [0], [0], [1], [0, 0, 1, 1], [], []>} : vector<8x8xf32>, vector<8x256xf32>, vector<8x256xf32> -> vector<8x256xf32>
    %36 = arith.addf %34, %35 : vector<8x256xf32>
    %cst_22 = arith.constant dense<0.000000e+00> : vector<8x256xf32>
    %37 = tpu.matmul %5, %33, %cst_22 {dimension_numbers = #tpu.dot_dimension_numbers<[1], [0], [0], [1], [0, 0, 1, 1], [], []>} : vector<8x8xf32>, vector<8x256xf32>, vector<8x256xf32> -> vector<8x256xf32>
    %38 = arith.addf %36, %37 : vector<8x256xf32>
    %39 = vector.broadcast %6 : vector<8x1xf32> to vector<8x256xf32>
    %40 = arith.addf %38, %39 : vector<8x256xf32>
    %41 = vector.extract_strided_slice %21 {offsets = [0, 0], sizes = [8, 1], strides = [1, 1]} : vector<8x256xf32> to vector<8x1xf32>
    %42 = vector.extract_strided_slice %21 {offsets = [0, 255], sizes = [8, 1], strides = [1, 1]} : vector<8x256xf32> to vector<8x1xf32>
    %43 = vector.extract_strided_slice %40 {offsets = [0, 0], sizes = [8, 1], strides = [1, 1]} : vector<8x256xf32> to vector<8x1xf32>
    %44 = vector.extract_strided_slice %40 {offsets = [0, 255], sizes = [8, 1], strides = [1, 1]} : vector<8x256xf32> to vector<8x1xf32>
    %cst_23 = arith.constant 2.000000e+00 : f32
    %45 = vector.broadcast %cst_23 : f32 to vector<8x1xf32>
    %46 = arith.mulf %45, %41 : vector<8x1xf32>
    %47 = vector.broadcast %8 : f32 to vector<8x1xf32>
    %48 = arith.mulf %44, %47 : vector<8x1xf32>
    %49 = arith.subf %43, %48 : vector<8x1xf32>
    %50 = vector.broadcast %9 : f32 to vector<8x1xf32>
    %51 = arith.mulf %50, %42 : vector<8x1xf32>
    %52 = arith.addf %49, %51 : vector<8x1xf32>
    %53 = vector.broadcast %7 : f32 to vector<8x1xf32>
    %54 = arith.mulf %53, %52 : vector<8x1xf32>
    %55 = arith.subf %46, %54 : vector<8x1xf32>
    %56 = arith.subf %55, %41 : vector<8x1xf32>
    %cst_24 = arith.constant 2.000000e+00 : f32
    %57 = vector.broadcast %cst_24 : f32 to vector<8x1xf32>
    %58 = arith.mulf %57, %42 : vector<8x1xf32>
    %59 = vector.broadcast %10 : f32 to vector<8x1xf32>
    %60 = arith.mulf %44, %59 : vector<8x1xf32>
    %61 = arith.subf %58, %60 : vector<8x1xf32>
    %62 = arith.subf %61, %42 : vector<8x1xf32>
    %cst_25 = arith.constant dense<0.000000e+00> : vector<8x1xf32>
    %63 = tpu.matmul %3, %56, %cst_25 {dimension_numbers = #tpu.dot_dimension_numbers<[1], [0], [0], [1], [0, 0, 1, 1], [], []>} : vector<8x8xf32>, vector<8x1xf32>, vector<8x1xf32> -> vector<8x1xf32>
    %64 = arith.addf %43, %63 : vector<8x1xf32>
    %cst_26 = arith.constant dense<0.000000e+00> : vector<8x1xf32>
    %65 = tpu.matmul %3, %62, %cst_26 {dimension_numbers = #tpu.dot_dimension_numbers<[1], [0], [0], [1], [0, 0, 1, 1], [], []>} : vector<8x8xf32>, vector<8x1xf32>, vector<8x1xf32> -> vector<8x1xf32>
    %66 = arith.addf %44, %65 : vector<8x1xf32>
    %cst_27 = arith.constant dense<0.000000e+00> : vector<8x1xf32>
    %67 = tpu.matmul %1, %56, %cst_27 {dimension_numbers = #tpu.dot_dimension_numbers<[1], [0], [0], [1], [0, 0, 1, 1], [], []>} : vector<8x8xf32>, vector<8x1xf32>, vector<8x1xf32> -> vector<8x1xf32>
    %cst_28 = arith.constant dense<0.000000e+00> : vector<8x1xf32>
    %68 = tpu.matmul %5, %62, %cst_28 {dimension_numbers = #tpu.dot_dimension_numbers<[1], [0], [0], [1], [0, 0, 1, 1], [], []>} : vector<8x8xf32>, vector<8x1xf32>, vector<8x1xf32> -> vector<8x1xf32>
    %c0_i32_29 = arith.constant 0 : i32
    %69 = vector.broadcast %c0_i32_29 : i32 to vector<8x256xi32>
    %70 = arith.cmpi eq, %11, %69 : vector<8x256xi32>
    %71 = vector.shape_cast %64 : vector<8x1xf32> to vector<8x1xf32>
    %72 = vector.broadcast %71 : vector<8x1xf32> to vector<8x256xf32>
    %73 = arith.select %70, %72, %40 : vector<8x256xi1>, vector<8x256xf32>
    %c255_i32_30 = arith.constant 255 : i32
    %74 = vector.broadcast %c255_i32_30 : i32 to vector<8x256xi32>
    %75 = arith.cmpi eq, %11, %74 : vector<8x256xi32>
    %76 = vector.shape_cast %66 : vector<8x1xf32> to vector<8x1xf32>
    %77 = vector.broadcast %76 : vector<8x1xf32> to vector<8x256xf32>
    %78 = arith.select %75, %77, %73 : vector<8x256xi1>, vector<8x256xf32>
    %c1_i32_31 = arith.constant 1 : i32
    %79 = vector.broadcast %c1_i32_31 : i32 to vector<8x256xi32>
    %80 = arith.cmpi eq, %11, %79 : vector<8x256xi32>
    %81 = vector.extract_strided_slice %40 {offsets = [0, 1], sizes = [8, 1], strides = [1, 1]} : vector<8x256xf32> to vector<8x1xf32>
    %82 = arith.addf %81, %67 : vector<8x1xf32>
    %83 = vector.shape_cast %82 : vector<8x1xf32> to vector<8x1xf32>
    %84 = vector.broadcast %83 : vector<8x1xf32> to vector<8x256xf32>
    %85 = arith.select %80, %84, %78 : vector<8x256xi1>, vector<8x256xf32>
    %c254_i32 = arith.constant 254 : i32
    %86 = vector.broadcast %c254_i32 : i32 to vector<8x256xi32>
    %87 = arith.cmpi eq, %11, %86 : vector<8x256xi32>
    %88 = vector.extract_strided_slice %40 {offsets = [0, 254], sizes = [8, 1], strides = [1, 1]} : vector<8x256xf32> to vector<8x1xf32>
    %89 = arith.addf %88, %68 : vector<8x1xf32>
    %90 = vector.shape_cast %89 : vector<8x1xf32> to vector<8x1xf32>
    %91 = vector.broadcast %90 : vector<8x1xf32> to vector<8x256xf32>
    %92 = arith.select %87, %91, %85 : vector<8x256xi1>, vector<8x256xf32>
    %c0_32 = arith.constant 0 : index
    %c0_33 = arith.constant 0 : index
    %c0_34 = arith.constant 0 : index
    %93 = vector.load %arg5[%c0_32, %c0_33, %c0_34] : memref<4x8x256xf32, #tpu.memory_space<vmem>>, vector<1x8x256xf32>
    %94 = vector.shape_cast %93 : vector<1x8x256xf32> to vector<8x256xf32>
    %95 = vector.shape_cast %92 : vector<8x256xf32> to vector<1x8x256xf32>
    tpu.vector_store %arg5[%c0_32, %c0_33, %c0_34], %95 {strides = array<i32>} : memref<4x8x256xf32, #tpu.memory_space<vmem>>, vector<1x8x256xf32>,
    %c1_35 = arith.constant 1 : index
    %c0_36 = arith.constant 0 : index
    %c0_37 = arith.constant 0 : index
    %96 = vector.load %arg2[%c1_35, %c0_36, %c0_37] : memref<4x8x256xf32, #tpu.memory_space<vmem>>, vector<1x8x256xf32>
    %97 = vector.shape_cast %96 : vector<1x8x256xf32> to vector<8x256xf32>
    %c1_i32_38 = arith.constant 1 : i32
    %98 = tpu.dynamic_rotate %97 by %c1_i32_38 dim 1 : vector<8x256xf32>, i32 -> vector<8x256xf32>
    %c255_i32_39 = arith.constant 255 : i32
    %99 = tpu.dynamic_rotate %97 by %c255_i32_39 dim 1 : vector<8x256xf32>, i32 -> vector<8x256xf32>
    %c0_i32_40 = arith.constant 0 : i32
    %100 = vector.broadcast %c0_i32_40 : i32 to vector<8x256xi32>
    %101 = arith.cmpi eq, %11, %100 : vector<8x256xi32>
    %102 = arith.select %19, %98, %99 : vector<8x256xi1>, vector<8x256xf32>
    %cst_41 = arith.constant 0.000000e+00 : f32
    %103 = vector.broadcast %cst_41 : f32 to vector<8x256xf32>
    %104 = arith.select %101, %103, %102 : vector<8x256xi1>, vector<8x256xf32>
    %c255_i32_42 = arith.constant 255 : i32
    %105 = vector.broadcast %c255_i32_42 : i32 to vector<8x256xi32>
    %106 = arith.cmpi eq, %11, %105 : vector<8x256xi32>
    %107 = arith.select %19, %99, %98 : vector<8x256xi1>, vector<8x256xf32>
    %cst_43 = arith.constant 0.000000e+00 : f32
    %108 = vector.broadcast %cst_43 : f32 to vector<8x256xf32>
    %109 = arith.select %106, %108, %107 : vector<8x256xi1>, vector<8x256xf32>
    %cst_44 = arith.constant dense<0.000000e+00> : vector<8x256xf32>
    %110 = tpu.matmul %1, %104, %cst_44 {dimension_numbers = #tpu.dot_dimension_numbers<[1], [0], [0], [1], [0, 0, 1, 1], [], []>} : vector<8x8xf32>, vector<8x256xf32>, vector<8x256xf32> -> vector<8x256xf32>
    %cst_45 = arith.constant dense<0.000000e+00> : vector<8x256xf32>
    %111 = tpu.matmul %3, %97, %cst_45 {dimension_numbers = #tpu.dot_dimension_numbers<[1], [0], [0], [1], [0, 0, 1, 1], [], []>} : vector<8x8xf32>, vector<8x256xf32>, vector<8x256xf32> -> vector<8x256xf32>
    %112 = arith.addf %110, %111 : vector<8x256xf32>
    %cst_46 = arith.constant dense<0.000000e+00> : vector<8x256xf32>
    %113 = tpu.matmul %5, %109, %cst_46 {dimension_numbers = #tpu.dot_dimension_numbers<[1], [0], [0], [1], [0, 0, 1, 1], [], []>} : vector<8x8xf32>, vector<8x256xf32>, vector<8x256xf32> -> vector<8x256xf32>
    %114 = arith.addf %112, %113 : vector<8x256xf32>
    %115 = vector.broadcast %6 : vector<8x1xf32> to vector<8x256xf32>
    %116 = arith.addf %114, %115 : vector<8x256xf32>
    %117 = vector.extract_strided_slice %97 {offsets = [0, 0], sizes = [8, 1], strides = [1, 1]} : vector<8x256xf32> to vector<8x1xf32>
    %118 = vector.extract_strided_slice %97 {offsets = [0, 255], sizes = [8, 1], strides = [1, 1]} : vector<8x256xf32> to vector<8x1xf32>
    %119 = vector.extract_strided_slice %116 {offsets = [0, 0], sizes = [8, 1], strides = [1, 1]} : vector<8x256xf32> to vector<8x1xf32>
    %120 = vector.extract_strided_slice %116 {offsets = [0, 255], sizes = [8, 1], strides = [1, 1]} : vector<8x256xf32> to vector<8x1xf32>
    %cst_47 = arith.constant 2.000000e+00 : f32
    %121 = vector.broadcast %cst_47 : f32 to vector<8x1xf32>
    %122 = arith.mulf %121, %117 : vector<8x1xf32>
    %123 = vector.broadcast %8 : f32 to vector<8x1xf32>
    %124 = arith.mulf %120, %123 : vector<8x1xf32>
    %125 = arith.subf %119, %124 : vector<8x1xf32>
    %126 = vector.broadcast %9 : f32 to vector<8x1xf32>
    %127 = arith.mulf %126, %118 : vector<8x1xf32>
    %128 = arith.addf %125, %127 : vector<8x1xf32>
    %129 = vector.broadcast %7 : f32 to vector<8x1xf32>
    %130 = arith.mulf %129, %128 : vector<8x1xf32>
    %131 = arith.subf %122, %130 : vector<8x1xf32>
    %132 = arith.subf %131, %117 : vector<8x1xf32>
    %cst_48 = arith.constant 2.000000e+00 : f32
    %133 = vector.broadcast %cst_48 : f32 to vector<8x1xf32>
    %134 = arith.mulf %133, %118 : vector<8x1xf32>
    %135 = vector.broadcast %10 : f32 to vector<8x1xf32>
    %136 = arith.mulf %120, %135 : vector<8x1xf32>
    %137 = arith.subf %134, %136 : vector<8x1xf32>
    %138 = arith.subf %137, %118 : vector<8x1xf32>
    %cst_49 = arith.constant dense<0.000000e+00> : vector<8x1xf32>
    %139 = tpu.matmul %3, %132, %cst_49 {dimension_numbers = #tpu.dot_dimension_numbers<[1], [0], [0], [1], [0, 0, 1, 1], [], []>} : vector<8x8xf32>, vector<8x1xf32>, vector<8x1xf32> -> vector<8x1xf32>
    %140 = arith.addf %119, %139 : vector<8x1xf32>
    %cst_50 = arith.constant dense<0.000000e+00> : vector<8x1xf32>
    %141 = tpu.matmul %3, %138, %cst_50 {dimension_numbers = #tpu.dot_dimension_numbers<[1], [0], [0], [1], [0, 0, 1, 1], [], []>} : vector<8x8xf32>, vector<8x1xf32>, vector<8x1xf32> -> vector<8x1xf32>
    %142 = arith.addf %120, %141 : vector<8x1xf32>
    %cst_51 = arith.constant dense<0.000000e+00> : vector<8x1xf32>
    %143 = tpu.matmul %1, %132, %cst_51 {dimension_numbers = #tpu.dot_dimension_numbers<[1], [0], [0], [1], [0, 0, 1, 1], [], []>} : vector<8x8xf32>, vector<8x1xf32>, vector<8x1xf32> -> vector<8x1xf32>
    %cst_52 = arith.constant dense<0.000000e+00> : vector<8x1xf32>
    %144 = tpu.matmul %5, %138, %cst_52 {dimension_numbers = #tpu.dot_dimension_numbers<[1], [0], [0], [1], [0, 0, 1, 1], [], []>} : vector<8x8xf32>, vector<8x1xf32>, vector<8x1xf32> -> vector<8x1xf32>
    %c0_i32_53 = arith.constant 0 : i32
    %145 = vector.broadcast %c0_i32_53 : i32 to vector<8x256xi32>
    %146 = arith.cmpi eq, %11, %145 : vector<8x256xi32>
    %147 = vector.shape_cast %140 : vector<8x1xf32> to vector<8x1xf32>
    %148 = vector.broadcast %147 : vector<8x1xf32> to vector<8x256xf32>
    %149 = arith.select %146, %148, %116 : vector<8x256xi1>, vector<8x256xf32>
    %c255_i32_54 = arith.constant 255 : i32
    %150 = vector.broadcast %c255_i32_54 : i32 to vector<8x256xi32>
    %151 = arith.cmpi eq, %11, %150 : vector<8x256xi32>
    %152 = vector.shape_cast %142 : vector<8x1xf32> to vector<8x1xf32>
    %153 = vector.broadcast %152 : vector<8x1xf32> to vector<8x256xf32>
    %154 = arith.select %151, %153, %149 : vector<8x256xi1>, vector<8x256xf32>
    %c1_i32_55 = arith.constant 1 : i32
    %155 = vector.broadcast %c1_i32_55 : i32 to vector<8x256xi32>
    %156 = arith.cmpi eq, %11, %155 : vector<8x256xi32>
    %157 = vector.extract_strided_slice %116 {offsets = [0, 1], sizes = [8, 1], strides = [1, 1]} : vector<8x256xf32> to vector<8x1xf32>
    %158 = arith.addf %157, %143 : vector<8x1xf32>
    %159 = vector.shape_cast %158 : vector<8x1xf32> to vector<8x1xf32>
    %160 = vector.broadcast %159 : vector<8x1xf32> to vector<8x256xf32>
    %161 = arith.select %156, %160, %154 : vector<8x256xi1>, vector<8x256xf32>
    %c254_i32_56 = arith.constant 254 : i32
    %162 = vector.broadcast %c254_i32_56 : i32 to vector<8x256xi32>
    %163 = arith.cmpi eq, %11, %162 : vector<8x256xi32>
    %164 = vector.extract_strided_slice %116 {offsets = [0, 254], sizes = [8, 1], strides = [1, 1]} : vector<8x256xf32> to vector<8x1xf32>
    %165 = arith.addf %164, %144 : vector<8x1xf32>
    %166 = vector.shape_cast %165 : vector<8x1xf32> to vector<8x1xf32>
    %167 = vector.broadcast %166 : vector<8x1xf32> to vector<8x256xf32>
    %168 = arith.select %163, %167, %161 : vector<8x256xi1>, vector<8x256xf32>
    %c1_57 = arith.constant 1 : index
    %c0_58 = arith.constant 0 : index
    %c0_59 = arith.constant 0 : index
    %169 = vector.load %arg5[%c1_57, %c0_58, %c0_59] : memref<4x8x256xf32, #tpu.memory_space<vmem>>, vector<1x8x256xf32>
    %170 = vector.shape_cast %169 : vector<1x8x256xf32> to vector<8x256xf32>
    %171 = vector.shape_cast %168 : vector<8x256xf32> to vector<1x8x256xf32>
    tpu.vector_store %arg5[%c1_57, %c0_58, %c0_59], %171 {strides = array<i32>} : memref<4x8x256xf32, #tpu.memory_space<vmem>>, vector<1x8x256xf32>,
    %c2_60 = arith.constant 2 : index
    %c0_61 = arith.constant 0 : index
    %c0_62 = arith.constant 0 : index
    %172 = vector.load %arg2[%c2_60, %c0_61, %c0_62] : memref<4x8x256xf32, #tpu.memory_space<vmem>>, vector<1x8x256xf32>
    %173 = vector.shape_cast %172 : vector<1x8x256xf32> to vector<8x256xf32>
    %c1_i32_63 = arith.constant 1 : i32
    %174 = tpu.dynamic_rotate %173 by %c1_i32_63 dim 1 : vector<8x256xf32>, i32 -> vector<8x256xf32>
    %c255_i32_64 = arith.constant 255 : i32
    %175 = tpu.dynamic_rotate %173 by %c255_i32_64 dim 1 : vector<8x256xf32>, i32 -> vector<8x256xf32>
    %c0_i32_65 = arith.constant 0 : i32
    %176 = vector.broadcast %c0_i32_65 : i32 to vector<8x256xi32>
    %177 = arith.cmpi eq, %11, %176 : vector<8x256xi32>
    %178 = arith.select %19, %174, %175 : vector<8x256xi1>, vector<8x256xf32>
    %cst_66 = arith.constant 0.000000e+00 : f32
    %179 = vector.broadcast %cst_66 : f32 to vector<8x256xf32>
    %180 = arith.select %177, %179, %178 : vector<8x256xi1>, vector<8x256xf32>
    %c255_i32_67 = arith.constant 255 : i32
    %181 = vector.broadcast %c255_i32_67 : i32 to vector<8x256xi32>
    %182 = arith.cmpi eq, %11, %181 : vector<8x256xi32>
    %183 = arith.select %19, %175, %174 : vector<8x256xi1>, vector<8x256xf32>
    %cst_68 = arith.constant 0.000000e+00 : f32
    %184 = vector.broadcast %cst_68 : f32 to vector<8x256xf32>
    %185 = arith.select %182, %184, %183 : vector<8x256xi1>, vector<8x256xf32>
    %cst_69 = arith.constant dense<0.000000e+00> : vector<8x256xf32>
    %186 = tpu.matmul %1, %180, %cst_69 {dimension_numbers = #tpu.dot_dimension_numbers<[1], [0], [0], [1], [0, 0, 1, 1], [], []>} : vector<8x8xf32>, vector<8x256xf32>, vector<8x256xf32> -> vector<8x256xf32>
    %cst_70 = arith.constant dense<0.000000e+00> : vector<8x256xf32>
    %187 = tpu.matmul %3, %173, %cst_70 {dimension_numbers = #tpu.dot_dimension_numbers<[1], [0], [0], [1], [0, 0, 1, 1], [], []>} : vector<8x8xf32>, vector<8x256xf32>, vector<8x256xf32> -> vector<8x256xf32>
    %188 = arith.addf %186, %187 : vector<8x256xf32>
    %cst_71 = arith.constant dense<0.000000e+00> : vector<8x256xf32>
    %189 = tpu.matmul %5, %185, %cst_71 {dimension_numbers = #tpu.dot_dimension_numbers<[1], [0], [0], [1], [0, 0, 1, 1], [], []>} : vector<8x8xf32>, vector<8x256xf32>, vector<8x256xf32> -> vector<8x256xf32>
    %190 = arith.addf %188, %189 : vector<8x256xf32>
    %191 = vector.broadcast %6 : vector<8x1xf32> to vector<8x256xf32>
    %192 = arith.addf %190, %191 : vector<8x256xf32>
    %193 = vector.extract_strided_slice %173 {offsets = [0, 0], sizes = [8, 1], strides = [1, 1]} : vector<8x256xf32> to vector<8x1xf32>
    %194 = vector.extract_strided_slice %173 {offsets = [0, 255], sizes = [8, 1], strides = [1, 1]} : vector<8x256xf32> to vector<8x1xf32>
    %195 = vector.extract_strided_slice %192 {offsets = [0, 0], sizes = [8, 1], strides = [1, 1]} : vector<8x256xf32> to vector<8x1xf32>
    %196 = vector.extract_strided_slice %192 {offsets = [0, 255], sizes = [8, 1], strides = [1, 1]} : vector<8x256xf32> to vector<8x1xf32>
    %cst_72 = arith.constant 2.000000e+00 : f32
    %197 = vector.broadcast %cst_72 : f32 to vector<8x1xf32>
    %198 = arith.mulf %197, %193 : vector<8x1xf32>
    %199 = vector.broadcast %8 : f32 to vector<8x1xf32>
    %200 = arith.mulf %196, %199 : vector<8x1xf32>
    %201 = arith.subf %195, %200 : vector<8x1xf32>
    %202 = vector.broadcast %9 : f32 to vector<8x1xf32>
    %203 = arith.mulf %202, %194 : vector<8x1xf32>
    %204 = arith.addf %201, %203 : vector<8x1xf32>
    %205 = vector.broadcast %7 : f32 to vector<8x1xf32>
    %206 = arith.mulf %205, %204 : vector<8x1xf32>
    %207 = arith.subf %198, %206 : vector<8x1xf32>
    %208 = arith.subf %207, %193 : vector<8x1xf32>
    %cst_73 = arith.constant 2.000000e+00 : f32
    %209 = vector.broadcast %cst_73 : f32 to vector<8x1xf32>
    %210 = arith.mulf %209, %194 : vector<8x1xf32>
    %211 = vector.broadcast %10 : f32 to vector<8x1xf32>
    %212 = arith.mulf %196, %211 : vector<8x1xf32>
    %213 = arith.subf %210, %212 : vector<8x1xf32>
    %214 = arith.subf %213, %194 : vector<8x1xf32>
    %cst_74 = arith.constant dense<0.000000e+00> : vector<8x1xf32>
    %215 = tpu.matmul %3, %208, %cst_74 {dimension_numbers = #tpu.dot_dimension_numbers<[1], [0], [0], [1], [0, 0, 1, 1], [], []>} : vector<8x8xf32>, vector<8x1xf32>, vector<8x1xf32> -> vector<8x1xf32>
    %216 = arith.addf %195, %215 : vector<8x1xf32>
    %cst_75 = arith.constant dense<0.000000e+00> : vector<8x1xf32>
    %217 = tpu.matmul %3, %214, %cst_75 {dimension_numbers = #tpu.dot_dimension_numbers<[1], [0], [0], [1], [0, 0, 1, 1], [], []>} : vector<8x8xf32>, vector<8x1xf32>, vector<8x1xf32> -> vector<8x1xf32>
    %218 = arith.addf %196, %217 : vector<8x1xf32>
    %cst_76 = arith.constant dense<0.000000e+00> : vector<8x1xf32>
    %219 = tpu.matmul %1, %208, %cst_76 {dimension_numbers = #tpu.dot_dimension_numbers<[1], [0], [0], [1], [0, 0, 1, 1], [], []>} : vector<8x8xf32>, vector<8x1xf32>, vector<8x1xf32> -> vector<8x1xf32>
    %cst_77 = arith.constant dense<0.000000e+00> : vector<8x1xf32>
    %220 = tpu.matmul %5, %214, %cst_77 {dimension_numbers = #tpu.dot_dimension_numbers<[1], [0], [0], [1], [0, 0, 1, 1], [], []>} : vector<8x8xf32>, vector<8x1xf32>, vector<8x1xf32> -> vector<8x1xf32>
    %c0_i32_78 = arith.constant 0 : i32
    %221 = vector.broadcast %c0_i32_78 : i32 to vector<8x256xi32>
    %222 = arith.cmpi eq, %11, %221 : vector<8x256xi32>
    %223 = vector.shape_cast %216 : vector<8x1xf32> to vector<8x1xf32>
    %224 = vector.broadcast %223 : vector<8x1xf32> to vector<8x256xf32>
    %225 = arith.select %222, %224, %192 : vector<8x256xi1>, vector<8x256xf32>
    %c255_i32_79 = arith.constant 255 : i32
    %226 = vector.broadcast %c255_i32_79 : i32 to vector<8x256xi32>
    %227 = arith.cmpi eq, %11, %226 : vector<8x256xi32>
    %228 = vector.shape_cast %218 : vector<8x1xf32> to vector<8x1xf32>
    %229 = vector.broadcast %228 : vector<8x1xf32> to vector<8x256xf32>
    %230 = arith.select %227, %229, %225 : vector<8x256xi1>, vector<8x256xf32>
    %c1_i32_80 = arith.constant 1 : i32
    %231 = vector.broadcast %c1_i32_80 : i32 to vector<8x256xi32>
    %232 = arith.cmpi eq, %11, %231 : vector<8x256xi32>
    %233 = vector.extract_strided_slice %192 {offsets = [0, 1], sizes = [8, 1], strides = [1, 1]} : vector<8x256xf32> to vector<8x1xf32>
    %234 = arith.addf %233, %219 : vector<8x1xf32>
    %235 = vector.shape_cast %234 : vector<8x1xf32> to vector<8x1xf32>
    %236 = vector.broadcast %235 : vector<8x1xf32> to vector<8x256xf32>
    %237 = arith.select %232, %236, %230 : vector<8x256xi1>, vector<8x256xf32>
    %c254_i32_81 = arith.constant 254 : i32
    %238 = vector.broadcast %c254_i32_81 : i32 to vector<8x256xi32>
    %239 = arith.cmpi eq, %11, %238 : vector<8x256xi32>
    %240 = vector.extract_strided_slice %192 {offsets = [0, 254], sizes = [8, 1], strides = [1, 1]} : vector<8x256xf32> to vector<8x1xf32>
    %241 = arith.addf %240, %220 : vector<8x1xf32>
    %242 = vector.shape_cast %241 : vector<8x1xf32> to vector<8x1xf32>
    %243 = vector.broadcast %242 : vector<8x1xf32> to vector<8x256xf32>
    %244 = arith.select %239, %243, %237 : vector<8x256xi1>, vector<8x256xf32>
    %c2_82 = arith.constant 2 : index
    %c0_83 = arith.constant 0 : index
    %c0_84 = arith.constant 0 : index
    %245 = vector.load %arg5[%c2_82, %c0_83, %c0_84] : memref<4x8x256xf32, #tpu.memory_space<vmem>>, vector<1x8x256xf32>
    %246 = vector.shape_cast %245 : vector<1x8x256xf32> to vector<8x256xf32>
    %247 = vector.shape_cast %244 : vector<8x256xf32> to vector<1x8x256xf32>
    tpu.vector_store %arg5[%c2_82, %c0_83, %c0_84], %247 {strides = array<i32>} : memref<4x8x256xf32, #tpu.memory_space<vmem>>, vector<1x8x256xf32>,
    %c3_85 = arith.constant 3 : index
    %c0_86 = arith.constant 0 : index
    %c0_87 = arith.constant 0 : index
    %248 = vector.load %arg2[%c3_85, %c0_86, %c0_87] : memref<4x8x256xf32, #tpu.memory_space<vmem>>, vector<1x8x256xf32>
    %249 = vector.shape_cast %248 : vector<1x8x256xf32> to vector<8x256xf32>
    %c1_i32_88 = arith.constant 1 : i32
    %250 = tpu.dynamic_rotate %249 by %c1_i32_88 dim 1 : vector<8x256xf32>, i32 -> vector<8x256xf32>
    %c255_i32_89 = arith.constant 255 : i32
    %251 = tpu.dynamic_rotate %249 by %c255_i32_89 dim 1 : vector<8x256xf32>, i32 -> vector<8x256xf32>
    %c0_i32_90 = arith.constant 0 : i32
    %252 = vector.broadcast %c0_i32_90 : i32 to vector<8x256xi32>
    %253 = arith.cmpi eq, %11, %252 : vector<8x256xi32>
    %254 = arith.select %19, %250, %251 : vector<8x256xi1>, vector<8x256xf32>
    %cst_91 = arith.constant 0.000000e+00 : f32
    %255 = vector.broadcast %cst_91 : f32 to vector<8x256xf32>
    %256 = arith.select %253, %255, %254 : vector<8x256xi1>, vector<8x256xf32>
    %c255_i32_92 = arith.constant 255 : i32
    %257 = vector.broadcast %c255_i32_92 : i32 to vector<8x256xi32>
    %258 = arith.cmpi eq, %11, %257 : vector<8x256xi32>
    %259 = arith.select %19, %251, %250 : vector<8x256xi1>, vector<8x256xf32>
    %cst_93 = arith.constant 0.000000e+00 : f32
    %260 = vector.broadcast %cst_93 : f32 to vector<8x256xf32>
    %261 = arith.select %258, %260, %259 : vector<8x256xi1>, vector<8x256xf32>
    %cst_94 = arith.constant dense<0.000000e+00> : vector<8x256xf32>
    %262 = tpu.matmul %1, %256, %cst_94 {dimension_numbers = #tpu.dot_dimension_numbers<[1], [0], [0], [1], [0, 0, 1, 1], [], []>} : vector<8x8xf32>, vector<8x256xf32>, vector<8x256xf32> -> vector<8x256xf32>
    %cst_95 = arith.constant dense<0.000000e+00> : vector<8x256xf32>
    %263 = tpu.matmul %3, %249, %cst_95 {dimension_numbers = #tpu.dot_dimension_numbers<[1], [0], [0], [1], [0, 0, 1, 1], [], []>} : vector<8x8xf32>, vector<8x256xf32>, vector<8x256xf32> -> vector<8x256xf32>
    %264 = arith.addf %262, %263 : vector<8x256xf32>
    %cst_96 = arith.constant dense<0.000000e+00> : vector<8x256xf32>
    %265 = tpu.matmul %5, %261, %cst_96 {dimension_numbers = #tpu.dot_dimension_numbers<[1], [0], [0], [1], [0, 0, 1, 1], [], []>} : vector<8x8xf32>, vector<8x256xf32>, vector<8x256xf32> -> vector<8x256xf32>
    %266 = arith.addf %264, %265 : vector<8x256xf32>
    %267 = vector.broadcast %6 : vector<8x1xf32> to vector<8x256xf32>
    %268 = arith.addf %266, %267 : vector<8x256xf32>
    %269 = vector.extract_strided_slice %249 {offsets = [0, 0], sizes = [8, 1], strides = [1, 1]} : vector<8x256xf32> to vector<8x1xf32>
    %270 = vector.extract_strided_slice %249 {offsets = [0, 255], sizes = [8, 1], strides = [1, 1]} : vector<8x256xf32> to vector<8x1xf32>
    %271 = vector.extract_strided_slice %268 {offsets = [0, 0], sizes = [8, 1], strides = [1, 1]} : vector<8x256xf32> to vector<8x1xf32>
    %272 = vector.extract_strided_slice %268 {offsets = [0, 255], sizes = [8, 1], strides = [1, 1]} : vector<8x256xf32> to vector<8x1xf32>
    %cst_97 = arith.constant 2.000000e+00 : f32
    %273 = vector.broadcast %cst_97 : f32 to vector<8x1xf32>
    %274 = arith.mulf %273, %269 : vector<8x1xf32>
    %275 = vector.broadcast %8 : f32 to vector<8x1xf32>
    %276 = arith.mulf %272, %275 : vector<8x1xf32>
    %277 = arith.subf %271, %276 : vector<8x1xf32>
    %278 = vector.broadcast %9 : f32 to vector<8x1xf32>
    %279 = arith.mulf %278, %270 : vector<8x1xf32>
    %280 = arith.addf %277, %279 : vector<8x1xf32>
    %281 = vector.broadcast %7 : f32 to vector<8x1xf32>
    %282 = arith.mulf %281, %280 : vector<8x1xf32>
    %283 = arith.subf %274, %282 : vector<8x1xf32>
    %284 = arith.subf %283, %269 : vector<8x1xf32>
    %cst_98 = arith.constant 2.000000e+00 : f32
    %285 = vector.broadcast %cst_98 : f32 to vector<8x1xf32>
    %286 = arith.mulf %285, %270 : vector<8x1xf32>
    %287 = vector.broadcast %10 : f32 to vector<8x1xf32>
    %288 = arith.mulf %272, %287 : vector<8x1xf32>
    %289 = arith.subf %286, %288 : vector<8x1xf32>
    %290 = arith.subf %289, %270 : vector<8x1xf32>
    %cst_99 = arith.constant dense<0.000000e+00> : vector<8x1xf32>
    %291 = tpu.matmul %3, %284, %cst_99 {dimension_numbers = #tpu.dot_dimension_numbers<[1], [0], [0], [1], [0, 0, 1, 1], [], []>} : vector<8x8xf32>, vector<8x1xf32>, vector<8x1xf32> -> vector<8x1xf32>
    %292 = arith.addf %271, %291 : vector<8x1xf32>
    %cst_100 = arith.constant dense<0.000000e+00> : vector<8x1xf32>
    %293 = tpu.matmul %3, %290, %cst_100 {dimension_numbers = #tpu.dot_dimension_numbers<[1], [0], [0], [1], [0, 0, 1, 1], [], []>} : vector<8x8xf32>, vector<8x1xf32>, vector<8x1xf32> -> vector<8x1xf32>
    %294 = arith.addf %272, %293 : vector<8x1xf32>
    %cst_101 = arith.constant dense<0.000000e+00> : vector<8x1xf32>
    %295 = tpu.matmul %1, %284, %cst_101 {dimension_numbers = #tpu.dot_dimension_numbers<[1], [0], [0], [1], [0, 0, 1, 1], [], []>} : vector<8x8xf32>, vector<8x1xf32>, vector<8x1xf32> -> vector<8x1xf32>
    %cst_102 = arith.constant dense<0.000000e+00> : vector<8x1xf32>
    %296 = tpu.matmul %5, %290, %cst_102 {dimension_numbers = #tpu.dot_dimension_numbers<[1], [0], [0], [1], [0, 0, 1, 1], [], []>} : vector<8x8xf32>, vector<8x1xf32>, vector<8x1xf32> -> vector<8x1xf32>
    %c0_i32_103 = arith.constant 0 : i32
    %297 = vector.broadcast %c0_i32_103 : i32 to vector<8x256xi32>
    %298 = arith.cmpi eq, %11, %297 : vector<8x256xi32>
    %299 = vector.shape_cast %292 : vector<8x1xf32> to vector<8x1xf32>
    %300 = vector.broadcast %299 : vector<8x1xf32> to vector<8x256xf32>
    %301 = arith.select %298, %300, %268 : vector<8x256xi1>, vector<8x256xf32>
    %c255_i32_104 = arith.constant 255 : i32
    %302 = vector.broadcast %c255_i32_104 : i32 to vector<8x256xi32>
    %303 = arith.cmpi eq, %11, %302 : vector<8x256xi32>
    %304 = vector.shape_cast %294 : vector<8x1xf32> to vector<8x1xf32>
    %305 = vector.broadcast %304 : vector<8x1xf32> to vector<8x256xf32>
    %306 = arith.select %303, %305, %301 : vector<8x256xi1>, vector<8x256xf32>
    %c1_i32_105 = arith.constant 1 : i32
    %307 = vector.broadcast %c1_i32_105 : i32 to vector<8x256xi32>
    %308 = arith.cmpi eq, %11, %307 : vector<8x256xi32>
    %309 = vector.extract_strided_slice %268 {offsets = [0, 1], sizes = [8, 1], strides = [1, 1]} : vector<8x256xf32> to vector<8x1xf32>
    %310 = arith.addf %309, %295 : vector<8x1xf32>
    %311 = vector.shape_cast %310 : vector<8x1xf32> to vector<8x1xf32>
    %312 = vector.broadcast %311 : vector<8x1xf32> to vector<8x256xf32>
    %313 = arith.select %308, %312, %306 : vector<8x256xi1>, vector<8x256xf32>
    %c254_i32_106 = arith.constant 254 : i32
    %314 = vector.broadcast %c254_i32_106 : i32 to vector<8x256xi32>
    %315 = arith.cmpi eq, %11, %314 : vector<8x256xi32>
    %316 = vector.extract_strided_slice %268 {offsets = [0, 254], sizes = [8, 1], strides = [1, 1]} : vector<8x256xf32> to vector<8x1xf32>
    %317 = arith.addf %316, %296 : vector<8x1xf32>
    %318 = vector.shape_cast %317 : vector<8x1xf32> to vector<8x1xf32>
    %319 = vector.broadcast %318 : vector<8x1xf32> to vector<8x256xf32>
    %320 = arith.select %315, %319, %313 : vector<8x256xi1>, vector<8x256xf32>
    %c3_107 = arith.constant 3 : index
    %c0_108 = arith.constant 0 : index
    %c0_109 = arith.constant 0 : index
    %321 = vector.load %arg5[%c3_107, %c0_108, %c0_109] : memref<4x8x256xf32, #tpu.memory_space<vmem>>, vector<1x8x256xf32>
    %322 = vector.shape_cast %321 : vector<1x8x256xf32> to vector<8x256xf32>
    %323 = vector.shape_cast %320 : vector<8x256xf32> to vector<1x8x256xf32>
    tpu.vector_store %arg5[%c3_107, %c0_108, %c0_109], %323 {strides = array<i32>} : memref<4x8x256xf32, #tpu.memory_space<vmem>>, vector<1x8x256xf32>,
    return
  }
  func.func @transform_0(%arg0: i32) -> i32 {
    %c0_i32 = arith.constant 0 : i32
    %c0_i32_0 = arith.constant 0 : i32
    return %c0_i32 : i32
  }
  func.func @transform_1(%arg0: i32) -> (i32, i32, i32) {
    %c0_i32 = arith.constant 0 : i32
    %c0_i32_0 = arith.constant 0 : i32
    %c0_i32_1 = arith.constant 0 : i32
    return %arg0, %c0_i32, %c0_i32_0 : i32, i32, i32
  }
  func.func @transform_2(%arg0: i32) -> (i32, i32, i32) {
    %c0_i32 = arith.constant 0 : i32
    %c0_i32_0 = arith.constant 0 : i32
    %c0_i32_1 = arith.constant 0 : i32
    %c0_i32_2 = arith.constant 0 : i32
    return %c0_i32, %c0_i32_0, %c0_i32_1 : i32, i32, i32
  }
  func.func @transform_3(%arg0: i32) -> (i32, i32) {
    %c0_i32 = arith.constant 0 : i32
    %c0_i32_0 = arith.constant 0 : i32
    %c0_i32_1 = arith.constant 0 : i32
    return %c0_i32, %c0_i32_0 : i32, i32
  }
  func.func @transform_4(%arg0: i32) -> (i32, i32, i32) {
    %c0_i32 = arith.constant 0 : i32
    %c0_i32_0 = arith.constant 0 : i32
    %c0_i32_1 = arith.constant 0 : i32
    return %arg0, %c0_i32, %c0_i32_0 : i32, i32, i32
  }
}

</mosaic_0001>

<llo_original>
// kernel: _lambda_.1
$region0: #{_lambda_.1}
  #allocation0 [shape = 'u32[]', space=smem, size = 0x4, offset = 0x4, fixed_abs, tag = 'smem constant byte address 0x4 - core index']
  #allocation1 [shape = 'u32[144,128]{1,0:T(1,128)}', space=vmem, size = 0x12000, scoped, tag = 'internal scratch']
  %s0 = inlined_call_operand.vmem [shape: f32[4], index: 0, kind: input, shape index: {}]
  %s1 = inlined_call_operand.hbm [shape: f32[4,8,256], index: 1, kind: input, shape index: {}]
  %s2 = inlined_call_operand.hbm [shape: f32[3,8,8], index: 2, kind: input, shape index: {}]
  %s3 = inlined_call_operand.hbm [shape: f32[8,1], index: 3, kind: input, shape index: {}]
  %s4 = inlined_call_operand.hbm [shape: f32[4,8,256], index: 4, kind: output, shape index: {}]
  %s5 = sld [smem:[#allocation0]]
  $region42: #{_lambda_.1} parent=0
    _
  %s7 = ssub.s32 1, %s5
  %s8 = scalar_select 0, %s7, %s5
  $region1: #{_lambda_.1} parent=0
    #allocation2 [shape = 'u8[512]{0}', space=smem, size = 0x200, scoped, tag = 'input window, operand 0, single buffered']
    #allocation3 [shape = 's32[1]{0}', space=sflag, size = 0x4, scoped, tag = 'scoped memory for _lambda_.1']
    #allocation4 [shape = 's32[1]{0}', space=sflag, size = 0x4, scoped, tag = 'scoped memory for _lambda_.1']
    #allocation5 [shape = 's32[1]{0}', space=sflag, size = 0x4, scoped, tag = 'scoped memory for _lambda_.1']
    #allocation6 [shape = 'u8[32768]{0}', space=vmem, size = 0x8000, scoped, tag = 'input window, operand 1, single buffered']
    #allocation7 [shape = 'u8[12288]{0}', space=vmem, size = 0x3000, scoped, tag = 'input window, operand 2, single buffered']
    #allocation8 [shape = 's32[1]{0}', space=sflag, size = 0x4, scoped, tag = 'scoped memory for _lambda_.1']
    #allocation9 [shape = 'u8[4096]{0}', space=vmem, size = 0x1000, scoped, tag = 'input window, operand 3, single buffered']
    #allocation10 [shape = 'u8[32768]{0}', space=vmem, size = 0x8000, scoped, tag = 'output window, operand 0, single buffered']
    %9 = vsyncpa [#allocation5], 0
    %10 = vsyncpa [#allocation3], 0
    %11 = vsyncpa [#allocation8], 0
    %12 = vsyncpa [#allocation4], 0
    // Predicated region
    $region2: #{_lambda_.1} parent=1 // pred_check
      _
    $region3: #{_lambda_.1} parent=1 // pred_check_branch
      %14 = sbr.rel (0) target = $region5
    $region4: #{_lambda_.1} parent=1 // pred_region
      %s16 = ssub.s32 16, 16
      %17 = vsyncadd [#allocation5], %s16
      %s19 = sshll.u32 %s0, 4
      %s20 = int_to_ptr.vmem [resolvable:$true] %s19
      %22 = dma.vmem_to_smem %s20, 16, [#allocation2], [#allocation5]
    $region5: #{_lambda_.1} parent=1 // pred_fallthru
      _
    // Predicated region
    $region6: #{_lambda_.1} parent=1 // pred_check
      _
    $region7: #{_lambda_.1} parent=1 // pred_check_branch
      %24 = sbr.rel (0) target = $region9
    $region8: #{_lambda_.1} parent=1 // pred_region
      %s26 = ssub.s32 1024, 1024
      %27 = vsyncadd [#allocation3], %s26
      %s28 = sshll.u32 [#allocation6], 4
      %s29 = int_to_ptr.vmem [resolvable:$true] %s28
      %34 = dma.hbm_to_vmem [thread:$0]  %s1, 1024, %s29, [#allocation3], 256, 256, 16
    $region9: #{_lambda_.1} parent=1 // pred_fallthru
      _
    // Predicated region
    $region10: #{_lambda_.1} parent=1 // pred_check
      _
    $region11: #{_lambda_.1} parent=1 // pred_check_branch
      %36 = sbr.rel (0) target = $region13
    $region12: #{_lambda_.1} parent=1 // pred_region
      %s38 = ssub.s32 384, 384
      %39 = vsyncadd [#allocation8], %s38
      %s40 = sshll.u32 [#allocation7], 4
      %s41 = int_to_ptr.vmem [resolvable:$true] %s40
      %46 = dma.hbm_to_vmem [thread:$0]  %s2, 384, %s41, [#allocation8], 128, 128, 8
    $region13: #{_lambda_.1} parent=1 // pred_fallthru
      _
    // Predicated region
    $region14: #{_lambda_.1} parent=1 // pred_check
      _
    $region15: #{_lambda_.1} parent=1 // pred_check_branch
      %48 = sbr.rel (0) target = $region17
    $region16: #{_lambda_.1} parent=1 // pred_region
      %s50 = ssub.s32 128, 128
      %51 = vsyncadd [#allocation8], %s50
      %s53 = sshll.u32 [#allocation9], 4
      %s54 = int_to_ptr.vmem [resolvable:$true] %s53
      %56 = dma.hbm_to_vmem [thread:$0]  %s3, 128, %s54, [#allocation8]
    $region17: #{_lambda_.1} parent=1 // pred_fallthru
      _
    // Predicated region
    $region18: #{_lambda_.1} parent=1 // pred_check
      _
    $region19: #{_lambda_.1} parent=1 // pred_check_branch
      %58 = sbr.rel (0) target = $region21
    $region20: #{_lambda_.1} parent=1 // pred_region
      %59 = dma.done [#allocation5], 16
    $region21: #{_lambda_.1} parent=1 // pred_fallthru
      _
    // Predicated region
    $region22: #{_lambda_.1} parent=1 // pred_check
      _
    $region23: #{_lambda_.1} parent=1 // pred_check_branch
      %61 = sbr.rel (0) target = $region25
    $region24: #{_lambda_.1} parent=1 // pred_region
      %62 = dma.done [#allocation3], 1024
    $region25: #{_lambda_.1} parent=1 // pred_fallthru
      _
    // Predicated region
    $region26: #{_lambda_.1} parent=1 // pred_check
      _
    $region27: #{_lambda_.1} parent=1 // pred_check_branch
      %64 = sbr.rel (0) target = $region29
    $region28: #{_lambda_.1} parent=1 // pred_region
      %65 = dma.done [#allocation8], 384
    $region29: #{_lambda_.1} parent=1 // pred_fallthru
      _
    // Predicated region
    $region30: #{_lambda_.1} parent=1 // pred_check
      _
    $region31: #{_lambda_.1} parent=1 // pred_check_branch
      %67 = sbr.rel (0) target = $region33
    $region32: #{_lambda_.1} parent=1 // pred_region
      %68 = dma.done [#allocation8], 128
    $region33: #{_lambda_.1} parent=1 // pred_fallthru
      _
    %69 = sfence
    %v70 = vld [vmem:[#allocation7] sm:$0xff]
    %s71 = scalar_lea.vmem [#allocation7], 8
    %v72 = vld [vmem:[%s71] sm:$0xff]
    %s73 = scalar_lea.vmem [#allocation7], 16
    %v74 = vld [vmem:[%s73] sm:$0xff]
    %v75 = vld [vmem:[#allocation9] sm:$0xff]
    %s76 = sld [smem:[#allocation2]]
    %s77 = sld [smem:[#allocation2 + $0x1]]
    %s78 = sld [smem:[#allocation2 + $0x2]]
    %s79 = sld [smem:[#allocation2 + $0x3]]
    %v80 = vlaneseq
    %v81 = vand.u32 %v80, 127
    %v82 = vadd.s32 %v81, 128
    %83 = vrot.lane.b32.xlu0 %v81, 1
    %v84 = vpop.permute.xlu0 %83
    %85 = vrot.lane.b32.xlu0 %v82, 1
    %v86 = vpop.permute.xlu0 %85
    %vm87 = vcmp.lt.s32.totalorder %v81, 1
    %v88 = vsel %vm87, %v84, %v86
    %v89 = vsel %vm87, %v86, %v84
    %vm90 = vcmp.eq.s32.totalorder %v81, 0
    %vm91 = vcmp.eq.s32.totalorder %v82, 0
    %v92 = vsub.s32 %v81, 1
    %v93 = vsub.s32 %v82, 1
    %v94 = vsel %vm90, 255, %v92
    %v95 = vsel %vm91, 255, %v93
    %vm96 = vcmp.eq.s32.totalorder %v89, %v94
    %vm97 = vcmp.eq.s32.totalorder %v88, %v95
    %v98 = vld [vmem:[#allocation6] sm:$0xff]
    %v99 = vld [vmem:[#allocation6 + $0x8] sm:$0xff]
    %100 = vrot.lane.b32.xlu0 %v98, 1
    %v101 = vpop.permute.xlu0 %100
    %102 = vrot.lane.b32.xlu0 %v99, 1
    %v103 = vpop.permute.xlu0 %102
    %v104 = vsel %vm87, %v101, %v103
    %v105 = vsel %vm87, %v103, %v101
    %106 = vrot.lane.b32.xlu0 %v98, 127
    %v107 = vpop.permute.xlu0 %106
    %108 = vrot.lane.b32.xlu0 %v99, 127
    %v109 = vpop.permute.xlu0 %108
    %vm110 = vcmp.lt.s32.totalorder %v81, 127
    %v111 = vsel %vm110, %v107, %v109
    %v112 = vsel %vm110, %v109, %v107
    %v113 = vsel %vm96, %v105, %v111
    %v114 = vsel %vm97, %v104, %v112
    %v115 = vsel %vm90, 0.0, %v113
    %v116 = vsel %vm91, 0.0, %v114
    %vm117 = vcmp.eq.s32.totalorder %v81, 255
    %vm118 = vcmp.eq.s32.totalorder %v82, 255
    %v119 = vsel %vm96, %v111, %v105
    %v120 = vsel %vm97, %v112, %v104
    %v121 = vsel %vm117, 0.0, %v119
    %v122 = vsel %vm118, 0.0, %v120
    %vm123 = vcmask 64512
    %v125 = vsel %vm123, %v72, 0
    %127 = vmatprep.subr.mxu0 %v99
    %128 = vmatpush1.msra.mxu0 %v98
    %129 = vmatprep.subr.mxu0 0.0
    %130 = vmatpush1.msra.mxu0 0.0
    %131 = vmatprep.subr.mxu0 0.0
    %132 = vmatpush1.msra.mxu0 0.0
    %133 = vmatprep.subr.mxu0 0.0
    %134 = vmatpush1.msra.mxu0 0.0
    %135 = vmatprep.subr.mxu0 0.0
    %136 = vmatpush1.msra.mxu0 0.0
    %137 = vmatprep.subr.mxu0 0.0
    %138 = vmatpush1.msra.mxu0 0.0
    %139 = vmatprep.subr.mxu0 0.0
    %140 = vmatpush1.msra.mxu0 0.0
    %141 = vmatprep.subr.mxu0 0.0
    %142 = vmatpush1.msra.mxu0 0.0
    %143 = vmatprep.subr.mxu0 0.0
    %144 = vmatpush1.msra.mxu0 0.0
    %145 = vmatprep.subr.mxu0 0.0
    %146 = vmatpush1.msra.mxu0 0.0
    %147 = vmatprep.subr.mxu0 0.0
    %148 = vmatpush1.msra.mxu0 0.0
    %149 = vmatprep.subr.mxu0 0.0
    %150 = vmatpush1.msra.mxu0 0.0
    %151 = vmatprep.subr.mxu0 0.0
    %152 = vmatpush1.msra.mxu0 0.0
    %153 = vmatprep.subr.mxu0 0.0
    %154 = vmatpush1.msra.mxu0 0.0
    %155 = vmatprep.subr.mxu0 0.0
    %156 = vmatpush1.msra.mxu0 0.0
    %157 = vmatprep.subr.mxu0 0.0
    %158 = vmatpush1.msra.mxu0 0.0
    %159 = vmatprep.subr.mxu0 0.0
    %160 = vmatpush1.msra.mxu0 0.0
    %161 = vmatprep.subr.mxu0 0.0
    %162 = vmatpush1.msra.mxu0 0.0
    %163 = vmatprep.subr.mxu0 0.0
    %164 = vmatpush1.msra.mxu0 0.0
    %165 = vmatprep.subr.mxu0 0.0
    %166 = vmatpush1.msra.mxu0 0.0
    %167 = vmatprep.subr.mxu0 0.0
    %168 = vmatpush1.msra.mxu0 0.0
    %169 = vmatprep.subr.mxu0 0.0
    %170 = vmatpush1.msra.mxu0 0.0
    %171 = vmatprep.subr.mxu0 0.0
    %172 = vmatpush1.msra.mxu0 0.0
    %173 = vmatprep.subr.mxu0 0.0
    %174 = vmatpush1.msra.mxu0 0.0
    %175 = vmatprep.subr.mxu0 0.0
    %176 = vmatpush1.msra.mxu0 0.0
    %177 = vmatprep.subr.mxu0 0.0
    %178 = vmatpush1.msra.mxu0 0.0
    %179 = vmatprep.subr.mxu0 0.0
    %180 = vmatpush1.msra.mxu0 0.0
    %181 = vmatprep.subr.mxu0 0.0
    %182 = vmatpush1.msra.mxu0 0.0
    %183 = vmatprep.subr.mxu0 0.0
    %184 = vmatpush1.msra.mxu0 0.0
    %185 = vmatprep.subr.mxu0 0.0
    %186 = vmatpush1.msra.mxu0 0.0
    %187 = vmatprep.subr.mxu0 0.0
    %188 = vmatpush1.msra.mxu0 0.0
    %189 = vmatprep.subr.mxu0 0.0
    %190 = vmatpush1.msra.mxu0 0.0
    %191 = vmatprep.mubr.f32.mxu0 0.0
    %192 = vmatmul.mubr.f32.gmra.mrb[0].mxu0 %v125
    %v193 = vpop.f32.mrb[0].mxu0
    %v194 = vadd.f32 0.0, %v193
    %v195 = vpop.f32.mrb[0].mxu0
    %v196 = vadd.f32 0.0, %v195
    %197 = vdwg.mxu0
    %v199 = vsel %vm123, %v70, 0
    %201 = vmatprep.subr.mxu0 %v116
    %202 = vmatpush1.msra.mxu0 %v115
    %203 = vmatprep.subr.mxu0 0.0
    %204 = vmatpush1.msra.mxu0 0.0
    %205 = vmatprep.subr.mxu0 0.0
    %206 = vmatpush1.msra.mxu0 0.0
    %207 = vmatprep.subr.mxu0 0.0
    %208 = vmatpush1.msra.mxu0 0.0
    %209 = vmatprep.subr.mxu0 0.0
    %210 = vmatpush1.msra.mxu0 0.0
    %211 = vmatprep.subr.mxu0 0.0
    %212 = vmatpush1.msra.mxu0 0.0
    %213 = vmatprep.subr.mxu0 0.0
    %214 = vmatpush1.msra.mxu0 0.0
    %215 = vmatprep.subr.mxu0 0.0
    %216 = vmatpush1.msra.mxu0 0.0
    %217 = vmatprep.subr.mxu0 0.0
    %218 = vmatpush1.msra.mxu0 0.0
    %219 = vmatprep.subr.mxu0 0.0
    %220 = vmatpush1.msra.mxu0 0.0
    %221 = vmatprep.subr.mxu0 0.0
    %222 = vmatpush1.msra.mxu0 0.0
    %223 = vmatprep.subr.mxu0 0.0
    %224 = vmatpush1.msra.mxu0 0.0
    %225 = vmatprep.subr.mxu0 0.0
    %226 = vmatpush1.msra.mxu0 0.0
    %227 = vmatprep.subr.mxu0 0.0
    %228 = vmatpush1.msra.mxu0 0.0
    %229 = vmatprep.subr.mxu0 0.0
    %230 = vmatpush1.msra.mxu0 0.0
    %231 = vmatprep.subr.mxu0 0.0
    %232 = vmatpush1.msra.mxu0 0.0
    %233 = vmatprep.subr.mxu0 0.0
    %234 = vmatpush1.msra.mxu0 0.0
    %235 = vmatprep.subr.mxu0 0.0
    %236 = vmatpush1.msra.mxu0 0.0
    %237 = vmatprep.subr.mxu0 0.0
    %238 = vmatpush1.msra.mxu0 0.0
    %239 = vmatprep.subr.mxu0 0.0
    %240 = vmatpush1.msra.mxu0 0.0
    %241 = vmatprep.subr.mxu0 0.0
    %242 = vmatpush1.msra.mxu0 0.0
    %243 = vmatprep.subr.mxu0 0.0
    %244 = vmatpush1.msra.mxu0 0.0
    %245 = vmatprep.subr.mxu0 0.0
    %246 = vmatpush1.msra.mxu0 0.0
    %247 = vmatprep.subr.mxu0 0.0
    %248 = vmatpush1.msra.mxu0 0.0
    %249 = vmatprep.subr.mxu0 0.0
    %250 = vmatpush1.msra.mxu0 0.0
    %251 = vmatprep.subr.mxu0 0.0
    %252 = vmatpush1.msra.mxu0 0.0
    %253 = vmatprep.subr.mxu0 0.0
    %254 = vmatpush1.msra.mxu0 0.0
    %255 = vmatprep.subr.mxu0 0.0
    %256 = vmatpush1.msra.mxu0 0.0
    %257 = vmatprep.subr.mxu0 0.0
    %258 = vmatpush1.msra.mxu0 0.0
    %259 = vmatprep.subr.mxu0 0.0
    %260 = vmatpush1.msra.mxu0 0.0
    %261 = vmatprep.subr.mxu0 0.0
    %262 = vmatpush1.msra.mxu0 0.0
    %263 = vmatprep.subr.mxu0 0.0
    %264 = vmatpush1.msra.mxu0 0.0
    %265 = vmatprep.mubr.f32.mxu0 0.0
    %266 = vmatmul.mubr.f32.gmra.mrb[0].mxu0 %v199
    %v267 = vpop.f32.mrb[0].mxu0
    %v268 = vadd.f32 %v194, %v267
    %v269 = vpop.f32.mrb[0].mxu0
    %v270 = vadd.f32 %v196, %v269
    %271 = vdwg.mxu0
    %v273 = vsel %vm123, %v74, 0
    %275 = vmatprep.subr.mxu0 %v122
    %276 = vmatpush1.msra.mxu0 %v121
    %277 = vmatprep.subr.mxu0 0.0
    %278 = vmatpush1.msra.mxu0 0.0
    %279 = vmatprep.subr.mxu0 0.0
    %280 = vmatpush1.msra.mxu0 0.0
    %281 = vmatprep.subr.mxu0 0.0
    %282 = vmatpush1.msra.mxu0 0.0
    %283 = vmatprep.subr.mxu0 0.0
    %284 = vmatpush1.msra.mxu0 0.0
    %285 = vmatprep.subr.mxu0 0.0
    %286 = vmatpush1.msra.mxu0 0.0
    %287 = vmatprep.subr.mxu0 0.0
    %288 = vmatpush1.msra.mxu0 0.0
    %289 = vmatprep.subr.mxu0 0.0
    %290 = vmatpush1.msra.mxu0 0.0
    %291 = vmatprep.subr.mxu0 0.0
    %292 = vmatpush1.msra.mxu0 0.0
    %293 = vmatprep.subr.mxu0 0.0
    %294 = vmatpush1.msra.mxu0 0.0
    %295 = vmatprep.subr.mxu0 0.0
    %296 = vmatpush1.msra.mxu0 0.0
    %297 = vmatprep.subr.mxu0 0.0
    %298 = vmatpush1.msra.mxu0 0.0
    %299 = vmatprep.subr.mxu0 0.0
    %300 = vmatpush1.msra.mxu0 0.0
    %301 = vmatprep.subr.mxu0 0.0
    %302 = vmatpush1.msra.mxu0 0.0
    %303 = vmatprep.subr.mxu0 0.0
    %304 = vmatpush1.msra.mxu0 0.0
    %305 = vmatprep.subr.mxu0 0.0
    %306 = vmatpush1.msra.mxu0 0.0
    %307 = vmatprep.subr.mxu0 0.0
    %308 = vmatpush1.msra.mxu0 0.0
    %309 = vmatprep.subr.mxu0 0.0
    %310 = vmatpush1.msra.mxu0 0.0
    %311 = vmatprep.subr.mxu0 0.0
    %312 = vmatpush1.msra.mxu0 0.0
    %313 = vmatprep.subr.mxu0 0.0
    %314 = vmatpush1.msra.mxu0 0.0
    %315 = vmatprep.subr.mxu0 0.0
    %316 = vmatpush1.msra.mxu0 0.0
    %317 = vmatprep.subr.mxu0 0.0
    %318 = vmatpush1.msra.mxu0 0.0
    %319 = vmatprep.subr.mxu0 0.0
    %320 = vmatpush1.msra.mxu0 0.0
    %321 = vmatprep.subr.mxu0 0.0
    %322 = vmatpush1.msra.mxu0 0.0
    %323 = vmatprep.subr.mxu0 0.0
    %324 = vmatpush1.msra.mxu0 0.0
    %325 = vmatprep.subr.mxu0 0.0
    %326 = vmatpush1.msra.mxu0 0.0
    %327 = vmatprep.subr.mxu0 0.0
    %328 = vmatpush1.msra.mxu0 0.0
    %329 = vmatprep.subr.mxu0 0.0
    %330 = vmatpush1.msra.mxu0 0.0
    %331 = vmatprep.subr.mxu0 0.0
    %332 = vmatpush1.msra.mxu0 0.0
    %333 = vmatprep.subr.mxu0 0.0
    %334 = vmatpush1.msra.mxu0 0.0
    %335 = vmatprep.subr.mxu0 0.0
    %336 = vmatpush1.msra.mxu0 0.0
    %337 = vmatprep.subr.mxu0 0.0
    %338 = vmatpush1.msra.mxu0 0.0
    %339 = vmatprep.mubr.f32.mxu0 0.0
    %340 = vmatmul.mubr.f32.gmra.mrb[0].mxu0 %v273
    %v341 = vpop.f32.mrb[0].mxu0
    %v342 = vadd.f32 0.0, %v341
    %v343 = vpop.f32.mrb[0].mxu0
    %v344 = vadd.f32 0.0, %v343
    %345 = vdwg.mxu0
    %v346 = vadd.f32 %v268, %v342
    %v347 = vadd.f32 %v270, %v344
    %349 = vset.pattern.permute.xlu0 0
    %350 = vperm.xlu0 %349, %v75
    %v351 = vpop.permute.xlu0 %350
    %v353 = vadd.f32 %v346, %v351
    %v354 = vadd.f32 %v347, %v351
    %v355 = vmul.f32 %v98, 2.0
    %v356 = vstv %s77
    %v357 = vmul.f32 %v354, %v356
    %359 = vrot.lane.b32.xlu0 %v357, 1
    %v360 = vpop.permute.xlu0 %359
    %v362 = vsub.f32 %v353, %v360
    %v363 = vstv %s78
    %v364 = vmul.f32 %v363, %v99
    %366 = vrot.lane.b32.xlu0 %v364, 1
    %v367 = vpop.permute.xlu0 %366
    %v369 = vadd.f32 %v362, %v367
    %v370 = vstv %s76
    %v371 = vmul.f32 %v370, %v369
    %v372 = vsub.f32 %v355, %v371
    %v373 = vsub.f32 %v372, %v98
    %v374 = vmul.f32 %v99, 2.0
    %v375 = vstv %s79
    %v376 = vmul.f32 %v354, %v375
    %v377 = vsub.f32 %v374, %v376
    %v378 = vsub.f32 %v377, %v99
    %379 = vmatprep.subr.mxu0 0.0
    %380 = vmatpush1.msra.mxu0 %v373
    %381 = vmatprep.subr.mxu0 0.0
    %382 = vmatpush1.msra.mxu0 0.0
    %383 = vmatprep.subr.mxu0 0.0
    %384 = vmatpush1.msra.mxu0 0.0
    %385 = vmatprep.subr.mxu0 0.0
    %386 = vmatpush1.msra.mxu0 0.0
    %387 = vmatprep.subr.mxu0 0.0
    %388 = vmatpush1.msra.mxu0 0.0
    %389 = vmatprep.subr.mxu0 0.0
    %390 = vmatpush1.msra.mxu0 0.0
    %391 = vmatprep.subr.mxu0 0.0
    %392 = vmatpush1.msra.mxu0 0.0
    %393 = vmatprep.subr.mxu0 0.0
    %394 = vmatpush1.msra.mxu0 0.0
    %395 = vmatprep.subr.mxu0 0.0
    %396 = vmatpush1.msra.mxu0 0.0
    %397 = vmatprep.subr.mxu0 0.0
    %398 = vmatpush1.msra.mxu0 0.0
    %399 = vmatprep.subr.mxu0 0.0
    %400 = vmatpush1.msra.mxu0 0.0
    %401 = vmatprep.subr.mxu0 0.0
    %402 = vmatpush1.msra.mxu0 0.0
    %403 = vmatprep.subr.mxu0 0.0
    %404 = vmatpush1.msra.mxu0 0.0
    %405 = vmatprep.subr.mxu0 0.0
    %406 = vmatpush1.msra.mxu0 0.0
    %407 = vmatprep.subr.mxu0 0.0
    %408 = vmatpush1.msra.mxu0 0.0
    %409 = vmatprep.subr.mxu0 0.0
    %410 = vmatpush1.msra.mxu0 0.0
    %411 = vmatprep.subr.mxu0 0.0
    %412 = vmatpush1.msra.mxu0 0.0
    %413 = vmatprep.subr.mxu0 0.0
    %414 = vmatpush1.msra.mxu0 0.0
    %415 = vmatprep.subr.mxu0 0.0
    %416 = vmatpush1.msra.mxu0 0.0
    %417 = vmatprep.subr.mxu0 0.0
    %418 = vmatpush1.msra.mxu0 0.0
    %419 = vmatprep.subr.mxu0 0.0
    %420 = vmatpush1.msra.mxu0 0.0
    %421 = vmatprep.subr.mxu0 0.0
    %422 = vmatpush1.msra.mxu0 0.0
    %423 = vmatprep.subr.mxu0 0.0
    %424 = vmatpush1.msra.mxu0 0.0
    %425 = vmatprep.subr.mxu0 0.0
    %426 = vmatpush1.msra.mxu0 0.0
    %427 = vmatprep.subr.mxu0 0.0
    %428 = vmatpush1.msra.mxu0 0.0
    %429 = vmatprep.subr.mxu0 0.0
    %430 = vmatpush1.msra.mxu0 0.0
    %431 = vmatprep.subr.mxu0 0.0
    %432 = vmatpush1.msra.mxu0 0.0
    %433 = vmatprep.subr.mxu0 0.0
    %434 = vmatpush1.msra.mxu0 0.0
    %435 = vmatprep.subr.mxu0 0.0
    %436 = vmatpush1.msra.mxu0 0.0
    %437 = vmatprep.subr.mxu0 0.0
    %438 = vmatpush1.msra.mxu0 0.0
    %439 = vmatprep.subr.mxu0 0.0
    %440 = vmatpush1.msra.mxu0 0.0
    %441 = vmatprep.subr.mxu0 0.0
    %442 = vmatpush1.msra.mxu0 0.0
    %443 = vmatprep.mubr.f32.mxu0 0.0
    %444 = vmatmul.mubr.f32.gmra.mrb[0].mxu0 %v125
    %v445 = vpop.f32.mrb[0].mxu0
    %v446 = vadd.f32 0.0, %v445
    %v447 = vpop.f32.mrb[0].mxu0
    %448 = vdwg.mxu0
    %v449 = vadd.f32 %v353, %v446
    %451 = vrot.lane.b32.xlu0 %v378, 1
    %v452 = vpop.permute.xlu0 %451
    %454 = vmatprep.subr.mxu0 0.0
    %455 = vmatpush1.msra.mxu0 %v452
    %456 = vmatprep.subr.mxu0 0.0
    %457 = vmatpush1.msra.mxu0 0.0
    %458 = vmatprep.subr.mxu0 0.0
    %459 = vmatpush1.msra.mxu0 0.0
    %460 = vmatprep.subr.mxu0 0.0
    %461 = vmatpush1.msra.mxu0 0.0
    %462 = vmatprep.subr.mxu0 0.0
    %463 = vmatpush1.msra.mxu0 0.0
    %464 = vmatprep.subr.mxu0 0.0
    %465 = vmatpush1.msra.mxu0 0.0
    %466 = vmatprep.subr.mxu0 0.0
    %467 = vmatpush1.msra.mxu0 0.0
    %468 = vmatprep.subr.mxu0 0.0
    %469 = vmatpush1.msra.mxu0 0.0
    %470 = vmatprep.subr.mxu0 0.0
    %471 = vmatpush1.msra.mxu0 0.0
    %472 = vmatprep.subr.mxu0 0.0
    %473 = vmatpush1.msra.mxu0 0.0
    %474 = vmatprep.subr.mxu0 0.0
    %475 = vmatpush1.msra.mxu0 0.0
    %476 = vmatprep.subr.mxu0 0.0
    %477 = vmatpush1.msra.mxu0 0.0
    %478 = vmatprep.subr.mxu0 0.0
    %479 = vmatpush1.msra.mxu0 0.0
    %480 = vmatprep.subr.mxu0 0.0
    %481 = vmatpush1.msra.mxu0 0.0
    %482 = vmatprep.subr.mxu0 0.0
    %483 = vmatpush1.msra.mxu0 0.0
    %484 = vmatprep.subr.mxu0 0.0
    %485 = vmatpush1.msra.mxu0 0.0
    %486 = vmatprep.subr.mxu0 0.0
    %487 = vmatpush1.msra.mxu0 0.0
    %488 = vmatprep.subr.mxu0 0.0
    %489 = vmatpush1.msra.mxu0 0.0
    %490 = vmatprep.subr.mxu0 0.0
    %491 = vmatpush1.msra.mxu0 0.0
    %492 = vmatprep.subr.mxu0 0.0
    %493 = vmatpush1.msra.mxu0 0.0
    %494 = vmatprep.subr.mxu0 0.0
    %495 = vmatpush1.msra.mxu0 0.0
    %496 = vmatprep.subr.mxu0 0.0
    %497 = vmatpush1.msra.mxu0 0.0
    %498 = vmatprep.subr.mxu0 0.0
    %499 = vmatpush1.msra.mxu0 0.0
    %500 = vmatprep.subr.mxu0 0.0
    %501 = vmatpush1.msra.mxu0 0.0
    %502 = vmatprep.subr.mxu0 0.0
    %503 = vmatpush1.msra.mxu0 0.0
    %504 = vmatprep.subr.mxu0 0.0
    %505 = vmatpush1.msra.mxu0 0.0
    %506 = vmatprep.subr.mxu0 0.0
    %507 = vmatpush1.msra.mxu0 0.0
    %508 = vmatprep.subr.mxu0 0.0
    %509 = vmatpush1.msra.mxu0 0.0
    %510 = vmatprep.subr.mxu0 0.0
    %511 = vmatpush1.msra.mxu0 0.0
    %512 = vmatprep.subr.mxu0 0.0
    %513 = vmatpush1.msra.mxu0 0.0
    %514 = vmatprep.subr.mxu0 0.0
    %515 = vmatpush1.msra.mxu0 0.0
    %516 = vmatprep.subr.mxu0 0.0
    %517 = vmatpush1.msra.mxu0 0.0
    %518 = vmatprep.mubr.f32.mxu0 0.0
    %519 = vmatmul.mubr.f32.gmra.mrb[0].mxu0 %v125
    %v520 = vpop.f32.mrb[0].mxu0
    %v521 = vadd.f32 0.0, %v520
    %v522 = vpop.f32.mrb[0].mxu0
    %523 = vdwg.mxu0
    %525 = vrot.lane.b32.xlu0 %v521, 127
    %v526 = vpop.permute.xlu0 %525
    %v528 = vadd.f32 %v354, %v526
    %529 = vmatprep.subr.mxu0 0.0
    %530 = vmatpush1.msra.mxu0 %v373
    %531 = vmatprep.subr.mxu0 0.0
    %532 = vmatpush1.msra.mxu0 0.0
    %533 = vmatprep.subr.mxu0 0.0
    %534 = vmatpush1.msra.mxu0 0.0
    %535 = vmatprep.subr.mxu0 0.0
    %536 = vmatpush1.msra.mxu0 0.0
    %537 = vmatprep.subr.mxu0 0.0
    %538 = vmatpush1.msra.mxu0 0.0
    %539 = vmatprep.subr.mxu0 0.0
    %540 = vmatpush1.msra.mxu0 0.0
    %541 = vmatprep.subr.mxu0 0.0
    %542 = vmatpush1.msra.mxu0 0.0
    %543 = vmatprep.subr.mxu0 0.0
    %544 = vmatpush1.msra.mxu0 0.0
    %545 = vmatprep.subr.mxu0 0.0
    %546 = vmatpush1.msra.mxu0 0.0
    %547 = vmatprep.subr.mxu0 0.0
    %548 = vmatpush1.msra.mxu0 0.0
    %549 = vmatprep.subr.mxu0 0.0
    %550 = vmatpush1.msra.mxu0 0.0
    %551 = vmatprep.subr.mxu0 0.0
    %552 = vmatpush1.msra.mxu0 0.0
    %553 = vmatprep.subr.mxu0 0.0
    %554 = vmatpush1.msra.mxu0 0.0
    %555 = vmatprep.subr.mxu0 0.0
    %556 = vmatpush1.msra.mxu0 0.0
    %557 = vmatprep.subr.mxu0 0.0
    %558 = vmatpush1.msra.mxu0 0.0
    %559 = vmatprep.subr.mxu0 0.0
    %560 = vmatpush1.msra.mxu0 0.0
    %561 = vmatprep.subr.mxu0 0.0
    %562 = vmatpush1.msra.mxu0 0.0
    %563 = vmatprep.subr.mxu0 0.0
    %564 = vmatpush1.msra.mxu0 0.0
    %565 = vmatprep.subr.mxu0 0.0
    %566 = vmatpush1.msra.mxu0 0.0
    %567 = vmatprep.subr.mxu0 0.0
    %568 = vmatpush1.msra.mxu0 0.0
    %569 = vmatprep.subr.mxu0 0.0
    %570 = vmatpush1.msra.mxu0 0.0
    %571 = vmatprep.subr.mxu0 0.0
    %572 = vmatpush1.msra.mxu0 0.0
    %573 = vmatprep.subr.mxu0 0.0
    %574 = vmatpush1.msra.mxu0 0.0
    %575 = vmatprep.subr.mxu0 0.0
    %576 = vmatpush1.msra.mxu0 0.0
    %577 = vmatprep.subr.mxu0 0.0
    %578 = vmatpush1.msra.mxu0 0.0
    %579 = vmatprep.subr.mxu0 0.0
    %580 = vmatpush1.msra.mxu0 0.0
    %581 = vmatprep.subr.mxu0 0.0
    %582 = vmatpush1.msra.mxu0 0.0
    %583 = vmatprep.subr.mxu0 0.0
    %584 = vmatpush1.msra.mxu0 0.0
    %585 = vmatprep.subr.mxu0 0.0
    %586 = vmatpush1.msra.mxu0 0.0
    %587 = vmatprep.subr.mxu0 0.0
    %588 = vmatpush1.msra.mxu0 0.0
    %589 = vmatprep.subr.mxu0 0.0
    %590 = vmatpush1.msra.mxu0 0.0
    %591 = vmatprep.subr.mxu0 0.0
    %592 = vmatpush1.msra.mxu0 0.0
    %593 = vmatprep.mubr.f32.mxu0 0.0
    %594 = vmatmul.mubr.f32.gmra.mrb[0].mxu0 %v199
    %v595 = vpop.f32.mrb[0].mxu0
    %v596 = vadd.f32 0.0, %v595
    %v597 = vpop.f32.mrb[0].mxu0
    %598 = vdwg.mxu0
    %599 = vmatprep.subr.mxu0 0.0
    %600 = vmatpush1.msra.mxu0 %v452
    %601 = vmatprep.subr.mxu0 0.0
    %602 = vmatpush1.msra.mxu0 0.0
    %603 = vmatprep.subr.mxu0 0.0
    %604 = vmatpush1.msra.mxu0 0.0
    %605 = vmatprep.subr.mxu0 0.0
    %606 = vmatpush1.msra.mxu0 0.0
    %607 = vmatprep.subr.mxu0 0.0
    %608 = vmatpush1.msra.mxu0 0.0
    %609 = vmatprep.subr.mxu0 0.0
    %610 = vmatpush1.msra.mxu0 0.0
    %611 = vmatprep.subr.mxu0 0.0
    %612 = vmatpush1.msra.mxu0 0.0
    %613 = vmatprep.subr.mxu0 0.0
    %614 = vmatpush1.msra.mxu0 0.0
    %615 = vmatprep.subr.mxu0 0.0
    %616 = vmatpush1.msra.mxu0 0.0
    %617 = vmatprep.subr.mxu0 0.0
    %618 = vmatpush1.msra.mxu0 0.0
    %619 = vmatprep.subr.mxu0 0.0
    %620 = vmatpush1.msra.mxu0 0.0
    %621 = vmatprep.subr.mxu0 0.0
    %622 = vmatpush1.msra.mxu0 0.0
    %623 = vmatprep.subr.mxu0 0.0
    %624 = vmatpush1.msra.mxu0 0.0
    %625 = vmatprep.subr.mxu0 0.0
    %626 = vmatpush1.msra.mxu0 0.0
    %627 = vmatprep.subr.mxu0 0.0
    %628 = vmatpush1.msra.mxu0 0.0
    %629 = vmatprep.subr.mxu0 0.0
    %630 = vmatpush1.msra.mxu0 0.0
    %631 = vmatprep.subr.mxu0 0.0
    %632 = vmatpush1.msra.mxu0 0.0
    %633 = vmatprep.subr.mxu0 0.0
    %634 = vmatpush1.msra.mxu0 0.0
    %635 = vmatprep.subr.mxu0 0.0
    %636 = vmatpush1.msra.mxu0 0.0
    %637 = vmatprep.subr.mxu0 0.0
    %638 = vmatpush1.msra.mxu0 0.0
    %639 = vmatprep.subr.mxu0 0.0
    %640 = vmatpush1.msra.mxu0 0.0
    %641 = vmatprep.subr.mxu0 0.0
    %642 = vmatpush1.msra.mxu0 0.0
    %643 = vmatprep.subr.mxu0 0.0
    %644 = vmatpush1.msra.mxu0 0.0
    %645 = vmatprep.subr.mxu0 0.0
    %646 = vmatpush1.msra.mxu0 0.0
    %647 = vmatprep.subr.mxu0 0.0
    %648 = vmatpush1.msra.mxu0 0.0
    %649 = vmatprep.subr.mxu0 0.0
    %650 = vmatpush1.msra.mxu0 0.0
    %651 = vmatprep.subr.mxu0 0.0
    %652 = vmatpush1.msra.mxu0 0.0
    %653 = vmatprep.subr.mxu0 0.0
    %654 = vmatpush1.msra.mxu0 0.0
    %655 = vmatprep.subr.mxu0 0.0
    %656 = vmatpush1.msra.mxu0 0.0
    %657 = vmatprep.subr.mxu0 0.0
    %658 = vmatpush1.msra.mxu0 0.0
    %659 = vmatprep.subr.mxu0 0.0
    %660 = vmatpush1.msra.mxu0 0.0
    %661 = vmatprep.subr.mxu0 0.0
    %662 = vmatpush1.msra.mxu0 0.0
    %663 = vmatprep.mubr.f32.mxu0 0.0
    %664 = vmatmul.mubr.f32.gmra.mrb[0].mxu0 %v273
    %v665 = vpop.f32.mrb[0].mxu0
    %v666 = vadd.f32 0.0, %v665
    %v667 = vpop.f32.mrb[0].mxu0
    %668 = vdwg.mxu0
    %670 = vset.pattern.permute.xlu0 0
    %671 = vperm.xlu0 %670, %v449
    %v672 = vpop.permute.xlu0 %671
    %v674 = vsel %vm90, %v672, %v353
    %v675 = vsel %vm91, %v672, %v354
    %677 = vset.pattern.permute.xlu0 127
    %678 = vperm.xlu0 %677, %v528
    %v679 = vpop.permute.xlu0 %678
    %v681 = vsel %vm117, %v679, %v674
    %v682 = vsel %vm118, %v679, %v675
    %vm683 = vcmp.eq.s32.totalorder %v81, 1
    %vm684 = vcmp.eq.s32.totalorder %v82, 1
    %686 = vrot.lane.b32.xlu0 %v596, 1
    %v687 = vpop.permute.xlu0 %686
    %v689 = vadd.f32 %v353, %v687
    %691 = vset.pattern.permute.xlu0 1
    %692 = vperm.xlu0 %691, %v689
    %v693 = vpop.permute.xlu0 %692
    %v695 = vsel %vm683, %v693, %v681
    %v696 = vsel %vm684, %v693, %v682
    %vm697 = vcmp.eq.s32.totalorder %v81, 254
    %vm698 = vcmp.eq.s32.totalorder %v82, 254
    %700 = vrot.lane.b32.xlu0 %v666, 126
    %v701 = vpop.permute.xlu0 %700
    %v703 = vadd.f32 %v354, %v701
    %705 = vset.pattern.permute.xlu0 126
    %706 = vperm.xlu0 %705, %v703
    %v707 = vpop.permute.xlu0 %706
    %v709 = vsel %vm697, %v707, %v695
    %v710 = vsel %vm698, %v707, %v696
    %711 = vst [vmem:[#allocation10] sm:$0xff] %v709
    %712 = vst [vmem:[#allocation10 + $0x8] sm:$0xff] %v710
    %s713 = scalar_lea.vmem [#allocation6], 16
    %v714 = vld [vmem:[%s713] sm:$0xff]
    %v715 = vld [vmem:[%s713 + $0x8] sm:$0xff]
    %716 = vrot.lane.b32.xlu0 %v714, 1
    %v717 = vpop.permute.xlu0 %716
    %718 = vrot.lane.b32.xlu0 %v715, 1
    %v719 = vpop.permute.xlu0 %718
    %v720 = vsel %vm87, %v717, %v719
    %v721 = vsel %vm87, %v719, %v717
    %722 = vrot.lane.b32.xlu0 %v714, 127
    %v723 = vpop.permute.xlu0 %722
    %724 = vrot.lane.b32.xlu0 %v715, 127
    %v725 = vpop.permute.xlu0 %724
    %v726 = vsel %vm110, %v723, %v725
    %v727 = vsel %vm110, %v725, %v723
    %v728 = vsel %vm96, %v721, %v726
    %v729 = vsel %vm97, %v720, %v727
    %v730 = vsel %vm90, 0.0, %v728
    %v731 = vsel %vm91, 0.0, %v729
    %v732 = vsel %vm96, %v726, %v721
    %v733 = vsel %vm97, %v727, %v720
    %v734 = vsel %vm117, 0.0, %v732
    %v735 = vsel %vm118, 0.0, %v733
    %736 = vmatprep.subr.mxu0 %v715
    %737 = vmatpush1.msra.mxu0 %v714
    %738 = vmatprep.subr.mxu0 0.0
    %739 = vmatpush1.msra.mxu0 0.0
    %740 = vmatprep.subr.mxu0 0.0
    %741 = vmatpush1.msra.mxu0 0.0
    %742 = vmatprep.subr.mxu0 0.0
    %743 = vmatpush1.msra.mxu0 0.0
    %744 = vmatprep.subr.mxu0 0.0
    %745 = vmatpush1.msra.mxu0 0.0
    %746 = vmatprep.subr.mxu0 0.0
    %747 = vmatpush1.msra.mxu0 0.0
    %748 = vmatprep.subr.mxu0 0.0
    %749 = vmatpush1.msra.mxu0 0.0
    %750 = vmatprep.subr.mxu0 0.0
    %751 = vmatpush1.msra.mxu0 0.0
    %752 = vmatprep.subr.mxu0 0.0
    %753 = vmatpush1.msra.mxu0 0.0
    %754 = vmatprep.subr.mxu0 0.0
    %755 = vmatpush1.msra.mxu0 0.0
    %756 = vmatprep.subr.mxu0 0.0
    %757 = vmatpush1.msra.mxu0 0.0
    %758 = vmatprep.subr.mxu0 0.0
    %759 = vmatpush1.msra.mxu0 0.0
    %760 = vmatprep.subr.mxu0 0.0
    %761 = vmatpush1.msra.mxu0 0.0
    %762 = vmatprep.subr.mxu0 0.0
    %763 = vmatpush1.msra.mxu0 0.0
    %764 = vmatprep.subr.mxu0 0.0
    %765 = vmatpush1.msra.mxu0 0.0
    %766 = vmatprep.subr.mxu0 0.0
    %767 = vmatpush1.msra.mxu0 0.0
    %768 = vmatprep.subr.mxu0 0.0
    %769 = vmatpush1.msra.mxu0 0.0
    %770 = vmatprep.subr.mxu0 0.0
    %771 = vmatpush1.msra.mxu0 0.0
    %772 = vmatprep.subr.mxu0 0.0
    %773 = vmatpush1.msra.mxu0 0.0
    %774 = vmatprep.subr.mxu0 0.0
    %775 = vmatpush1.msra.mxu0 0.0
    %776 = vmatprep.subr.mxu0 0.0
    %777 = vmatpush1.msra.mxu0 0.0
    %778 = vmatprep.subr.mxu0 0.0
    %779 = vmatpush1.msra.mxu0 0.0
    %780 = vmatprep.subr.mxu0 0.0
    %781 = vmatpush1.msra.mxu0 0.0
    %782 = vmatprep.subr.mxu0 0.0
    %783 = vmatpush1.msra.mxu0 0.0
    %784 = vmatprep.subr.mxu0 0.0
    %785 = vmatpush1.msra.mxu0 0.0
    %786 = vmatprep.subr.mxu0 0.0
    %787 = vmatpush1.msra.mxu0 0.0
    %788 = vmatprep.subr.mxu0 0.0
    %789 = vmatpush1.msra.mxu0 0.0
    %790 = vmatprep.subr.mxu0 0.0
    %791 = vmatpush1.msra.mxu0 0.0
    %792 = vmatprep.subr.mxu0 0.0
    %793 = vmatpush1.msra.mxu0 0.0
    %794 = vmatprep.subr.mxu0 0.0
    %795 = vmatpush1.msra.mxu0 0.0
    %796 = vmatprep.subr.mxu0 0.0
    %797 = vmatpush1.msra.mxu0 0.0
    %798 = vmatprep.subr.mxu0 0.0
    %799 = vmatpush1.msra.mxu0 0.0
    %800 = vmatprep.mubr.f32.mxu0 0.0
    %801 = vmatmul.mubr.f32.gmra.mrb[0].mxu0 %v125
    %v802 = vpop.f32.mrb[0].mxu0
    %v803 = vadd.f32 0.0, %v802
    %v804 = vpop.f32.mrb[0].mxu0
    %v805 = vadd.f32 0.0, %v804
    %806 = vdwg.mxu0
    %807 = vmatprep.subr.mxu0 %v731
    %808 = vmatpush1.msra.mxu0 %v730
    %809 = vmatprep.subr.mxu0 0.0
    %810 = vmatpush1.msra.mxu0 0.0
    %811 = vmatprep.subr.mxu0 0.0
    %812 = vmatpush1.msra.mxu0 0.0
    %813 = vmatprep.subr.mxu0 0.0
    %814 = vmatpush1.msra.mxu0 0.0
    %815 = vmatprep.subr.mxu0 0.0
    %816 = vmatpush1.msra.mxu0 0.0
    %817 = vmatprep.subr.mxu0 0.0
    %818 = vmatpush1.msra.mxu0 0.0
    %819 = vmatprep.subr.mxu0 0.0
    %820 = vmatpush1.msra.mxu0 0.0
    %821 = vmatprep.subr.mxu0 0.0
    %822 = vmatpush1.msra.mxu0 0.0
    %823 = vmatprep.subr.mxu0 0.0
    %824 = vmatpush1.msra.mxu0 0.0
    %825 = vmatprep.subr.mxu0 0.0
    %826 = vmatpush1.msra.mxu0 0.0
    %827 = vmatprep.subr.mxu0 0.0
    %828 = vmatpush1.msra.mxu0 0.0
    %829 = vmatprep.subr.mxu0 0.0
    %830 = vmatpush1.msra.mxu0 0.0
    %831 = vmatprep.subr.mxu0 0.0
    %832 = vmatpush1.msra.mxu0 0.0
    %833 = vmatprep.subr.mxu0 0.0
    %834 = vmatpush1.msra.mxu0 0.0
    %835 = vmatprep.subr.mxu0 0.0
    %836 = vmatpush1.msra.mxu0 0.0
    %837 = vmatprep.subr.mxu0 0.0
    %838 = vmatpush1.msra.mxu0 0.0
    %839 = vmatprep.subr.mxu0 0.0
    %840 = vmatpush1.msra.mxu0 0.0
    %841 = vmatprep.subr.mxu0 0.0
    %842 = vmatpush1.msra.mxu0 0.0
    %843 = vmatprep.subr.mxu0 0.0
    %844 = vmatpush1.msra.mxu0 0.0
    %845 = vmatprep.subr.mxu0 0.0
    %846 = vmatpush1.msra.mxu0 0.0
    %847 = vmatprep.subr.mxu0 0.0
    %848 = vmatpush1.msra.mxu0 0.0
    %849 = vmatprep.subr.mxu0 0.0
    %850 = vmatpush1.msra.mxu0 0.0
    %851 = vmatprep.subr.mxu0 0.0
    %852 = vmatpush1.msra.mxu0 0.0
    %853 = vmatprep.subr.mxu0 0.0
    %854 = vmatpush1.msra.mxu0 0.0
    %855 = vmatprep.subr.mxu0 0.0
    %856 = vmatpush1.msra.mxu0 0.0
    %857 = vmatprep.subr.mxu0 0.0
    %858 = vmatpush1.msra.mxu0 0.0
    %859 = vmatprep.subr.mxu0 0.0
    %860 = vmatpush1.msra.mxu0 0.0
    %861 = vmatprep.subr.mxu0 0.0
    %862 = vmatpush1.msra.mxu0 0.0
    %863 = vmatprep.subr.mxu0 0.0
    %864 = vmatpush1.msra.mxu0 0.0
    %865 = vmatprep.subr.mxu0 0.0
    %866 = vmatpush1.msra.mxu0 0.0
    %867 = vmatprep.subr.mxu0 0.0
    %868 = vmatpush1.msra.mxu0 0.0
    %869 = vmatprep.subr.mxu0 0.0
    %870 = vmatpush1.msra.mxu0 0.0
    %871 = vmatprep.mubr.f32.mxu0 0.0
    %872 = vmatmul.mubr.f32.gmra.mrb[0].mxu0 %v199
    %v873 = vpop.f32.mrb[0].mxu0
    %v874 = vadd.f32 %v803, %v873
    %v875 = vpop.f32.mrb[0].mxu0
    %v876 = vadd.f32 %v805, %v875
    %877 = vdwg.mxu0
    %878 = vmatprep.subr.mxu0 %v735
    %879 = vmatpush1.msra.mxu0 %v734
    %880 = vmatprep.subr.mxu0 0.0
    %881 = vmatpush1.msra.mxu0 0.0
    %882 = vmatprep.subr.mxu0 0.0
    %883 = vmatpush1.msra.mxu0 0.0
    %884 = vmatprep.subr.mxu0 0.0
    %885 = vmatpush1.msra.mxu0 0.0
    %886 = vmatprep.subr.mxu0 0.0
    %887 = vmatpush1.msra.mxu0 0.0
    %888 = vmatprep.subr.mxu0 0.0
    %889 = vmatpush1.msra.mxu0 0.0
    %890 = vmatprep.subr.mxu0 0.0
    %891 = vmatpush1.msra.mxu0 0.0
    %892 = vmatprep.subr.mxu0 0.0
    %893 = vmatpush1.msra.mxu0 0.0
    %894 = vmatprep.subr.mxu0 0.0
    %895 = vmatpush1.msra.mxu0 0.0
    %896 = vmatprep.subr.mxu0 0.0
    %897 = vmatpush1.msra.mxu0 0.0
    %898 = vmatprep.subr.mxu0 0.0
    %899 = vmatpush1.msra.mxu0 0.0
    %900 = vmatprep.subr.mxu0 0.0
    %901 = vmatpush1.msra.mxu0 0.0
    %902 = vmatprep.subr.mxu0 0.0
    %903 = vmatpush1.msra.mxu0 0.0
    %904 = vmatprep.subr.mxu0 0.0
    %905 = vmatpush1.msra.mxu0 0.0
    %906 = vmatprep.subr.mxu0 0.0
    %907 = vmatpush1.msra.mxu0 0.0
    %908 = vmatprep.subr.mxu0 0.0
    %909 = vmatpush1.msra.mxu0 0.0
    %910 = vmatprep.subr.mxu0 0.0
    %911 = vmatpush1.msra.mxu0 0.0
    %912 = vmatprep.subr.mxu0 0.0
    %913 = vmatpush1.msra.mxu0 0.0
    %914 = vmatprep.subr.mxu0 0.0
    %915 = vmatpush1.msra.mxu0 0.0
    %916 = vmatprep.subr.mxu0 0.0
    %917 = vmatpush1.msra.mxu0 0.0
    %918 = vmatprep.subr.mxu0 0.0
    %919 = vmatpush1.msra.mxu0 0.0
    %920 = vmatprep.subr.mxu0 0.0
    %921 = vmatpush1.msra.mxu0 0.0
    %922 = vmatprep.subr.mxu0 0.0
    %923 = vmatpush1.msra.mxu0 0.0
    %924 = vmatprep.subr.mxu0 0.0
    %925 = vmatpush1.msra.mxu0 0.0
    %926 = vmatprep.subr.mxu0 0.0
    %927 = vmatpush1.msra.mxu0 0.0
    %928 = vmatprep.subr.mxu0 0.0
    %929 = vmatpush1.msra.mxu0 0.0
    %930 = vmatprep.subr.mxu0 0.0
    %931 = vmatpush1.msra.mxu0 0.0
    %932 = vmatprep.subr.mxu0 0.0
    %933 = vmatpush1.msra.mxu0 0.0
    %934 = vmatprep.subr.mxu0 0.0
    %935 = vmatpush1.msra.mxu0 0.0
    %936 = vmatprep.subr.mxu0 0.0
    %937 = vmatpush1.msra.mxu0 0.0
    %938 = vmatprep.subr.mxu0 0.0
    %939 = vmatpush1.msra.mxu0 0.0
    %940 = vmatprep.subr.mxu0 0.0
    %941 = vmatpush1.msra.mxu0 0.0
    %942 = vmatprep.mubr.f32.mxu0 0.0
    %943 = vmatmul.mubr.f32.gmra.mrb[0].mxu0 %v273
    %v944 = vpop.f32.mrb[0].mxu0
    %v945 = vadd.f32 0.0, %v944
    %v946 = vpop.f32.mrb[0].mxu0
    %v947 = vadd.f32 0.0, %v946
    %948 = vdwg.mxu0
    %v949 = vadd.f32 %v874, %v945
    %v950 = vadd.f32 %v876, %v947
    %v951 = vadd.f32 %v949, %v351
    %v952 = vadd.f32 %v950, %v351
    %v953 = vmul.f32 %v714, 2.0
    %v954 = vmul.f32 %v952, %v356
    %956 = vrot.lane.b32.xlu0 %v954, 1
    %v957 = vpop.permute.xlu0 %956
    %v959 = vsub.f32 %v951, %v957
    %v960 = vmul.f32 %v363, %v715
    %962 = vrot.lane.b32.xlu0 %v960, 1
    %v963 = vpop.permute.xlu0 %962
    %v965 = vadd.f32 %v959, %v963
    %v966 = vmul.f32 %v370, %v965
    %v967 = vsub.f32 %v953, %v966
    %v968 = vsub.f32 %v967, %v714
    %v969 = vmul.f32 %v715, 2.0
    %v970 = vmul.f32 %v952, %v375
    %v971 = vsub.f32 %v969, %v970
    %v972 = vsub.f32 %v971, %v715
    %973 = vmatprep.subr.mxu0 0.0
    %974 = vmatpush1.msra.mxu0 %v968
    %975 = vmatprep.subr.mxu0 0.0
    %976 = vmatpush1.msra.mxu0 0.0
    %977 = vmatprep.subr.mxu0 0.0
    %978 = vmatpush1.msra.mxu0 0.0
    %979 = vmatprep.subr.mxu0 0.0
    %980 = vmatpush1.msra.mxu0 0.0
    %981 = vmatprep.subr.mxu0 0.0
    %982 = vmatpush1.msra.mxu0 0.0
    %983 = vmatprep.subr.mxu0 0.0
    %984 = vmatpush1.msra.mxu0 0.0
    %985 = vmatprep.subr.mxu0 0.0
    %986 = vmatpush1.msra.mxu0 0.0
    %987 = vmatprep.subr.mxu0 0.0
    %988 = vmatpush1.msra.mxu0 0.0
    %989 = vmatprep.subr.mxu0 0.0
    %990 = vmatpush1.msra.mxu0 0.0
    %991 = vmatprep.subr.mxu0 0.0
    %992 = vmatpush1.msra.mxu0 0.0
    %993 = vmatprep.subr.mxu0 0.0
    %994 = vmatpush1.msra.mxu0 0.0
    %995 = vmatprep.subr.mxu0 0.0
    %996 = vmatpush1.msra.mxu0 0.0
    %997 = vmatprep.subr.mxu0 0.0
    %998 = vmatpush1.msra.mxu0 0.0
    %999 = vmatprep.subr.mxu0 0.0
    %1000 = vmatpush1.msra.mxu0 0.0
    %1001 = vmatprep.subr.mxu0 0.0
    %1002 = vmatpush1.msra.mxu0 0.0
    %1003 = vmatprep.subr.mxu0 0.0
    %1004 = vmatpush1.msra.mxu0 0.0
    %1005 = vmatprep.subr.mxu0 0.0
    %1006 = vmatpush1.msra.mxu0 0.0
    %1007 = vmatprep.subr.mxu0 0.0
    %1008 = vmatpush1.msra.mxu0 0.0
    %1009 = vmatprep.subr.mxu0 0.0
    %1010 = vmatpush1.msra.mxu0 0.0
    %1011 = vmatprep.subr.mxu0 0.0
    %1012 = vmatpush1.msra.mxu0 0.0
    %1013 = vmatprep.subr.mxu0 0.0
    %1014 = vmatpush1.msra.mxu0 0.0
    %1015 = vmatprep.subr.mxu0 0.0
    %1016 = vmatpush1.msra.mxu0 0.0
    %1017 = vmatprep.subr.mxu0 0.0
    %1018 = vmatpush1.msra.mxu0 0.0
    %1019 = vmatprep.subr.mxu0 0.0
    %1020 = vmatpush1.msra.mxu0 0.0
    %1021 = vmatprep.subr.mxu0 0.0
    %1022 = vmatpush1.msra.mxu0 0.0
    %1023 = vmatprep.subr.mxu0 0.0
    %1024 = vmatpush1.msra.mxu0 0.0
    %1025 = vmatprep.subr.mxu0 0.0
    %1026 = vmatpush1.msra.mxu0 0.0
    %1027 = vmatprep.subr.mxu0 0.0
    %1028 = vmatpush1.msra.mxu0 0.0
    %1029 = vmatprep.subr.mxu0 0.0
    %1030 = vmatpush1.msra.mxu0 0.0
    %1031 = vmatprep.subr.mxu0 0.0
    %1032 = vmatpush1.msra.mxu0 0.0
    %1033 = vmatprep.subr.mxu0 0.0
    %1034 = vmatpush1.msra.mxu0 0.0
    %1035 = vmatprep.subr.mxu0 0.0
    %1036 = vmatpush1.msra.mxu0 0.0
    %1037 = vmatprep.mubr.f32.mxu0 0.0
    %1038 = vmatmul.mubr.f32.gmra.mrb[0].mxu0 %v125
    %v1039 = vpop.f32.mrb[0].mxu0
    %v1040 = vadd.f32 0.0, %v1039
    %v1041 = vpop.f32.mrb[0].mxu0
    %1042 = vdwg.mxu0
    %v1043 = vadd.f32 %v951, %v1040
    %1045 = vrot.lane.b32.xlu0 %v972, 1
    %v1046 = vpop.permute.xlu0 %1045
    %1048 = vmatprep.subr.mxu0 0.0
    %1049 = vmatpush1.msra.mxu0 %v1046
    %1050 = vmatprep.subr.mxu0 0.0
    %1051 = vmatpush1.msra.mxu0 0.0
    %1052 = vmatprep.subr.mxu0 0.0
    %1053 = vmatpush1.msra.mxu0 0.0
    %1054 = vmatprep.subr.mxu0 0.0
    %1055 = vmatpush1.msra.mxu0 0.0
    %1056 = vmatprep.subr.mxu0 0.0
    %1057 = vmatpush1.msra.mxu0 0.0
    %1058 = vmatprep.subr.mxu0 0.0
    %1059 = vmatpush1.msra.mxu0 0.0
    %1060 = vmatprep.subr.mxu0 0.0
    %1061 = vmatpush1.msra.mxu0 0.0
    %1062 = vmatprep.subr.mxu0 0.0
    %1063 = vmatpush1.msra.mxu0 0.0
    %1064 = vmatprep.subr.mxu0 0.0
    %1065 = vmatpush1.msra.mxu0 0.0
    %1066 = vmatprep.subr.mxu0 0.0
    %1067 = vmatpush1.msra.mxu0 0.0
    %1068 = vmatprep.subr.mxu0 0.0
    %1069 = vmatpush1.msra.mxu0 0.0
    %1070 = vmatprep.subr.mxu0 0.0
    %1071 = vmatpush1.msra.mxu0 0.0
    %1072 = vmatprep.subr.mxu0 0.0
    %1073 = vmatpush1.msra.mxu0 0.0
    %1074 = vmatprep.subr.mxu0 0.0
    %1075 = vmatpush1.msra.mxu0 0.0
    %1076 = vmatprep.subr.mxu0 0.0
    %1077 = vmatpush1.msra.mxu0 0.0
    %1078 = vmatprep.subr.mxu0 0.0
    %1079 = vmatpush1.msra.mxu0 0.0
    %1080 = vmatprep.subr.mxu0 0.0
    %1081 = vmatpush1.msra.mxu0 0.0
    %1082 = vmatprep.subr.mxu0 0.0
    %1083 = vmatpush1.msra.mxu0 0.0
    %1084 = vmatprep.subr.mxu0 0.0
    %1085 = vmatpush1.msra.mxu0 0.0
    %1086 = vmatprep.subr.mxu0 0.0
    %1087 = vmatpush1.msra.mxu0 0.0
    %1088 = vmatprep.subr.mxu0 0.0
    %1089 = vmatpush1.msra.mxu0 0.0
    %1090 = vmatprep.subr.mxu0 0.0
    %1091 = vmatpush1.msra.mxu0 0.0
    %1092 = vmatprep.subr.mxu0 0.0
    %1093 = vmatpush1.msra.mxu0 0.0
    %1094 = vmatprep.subr.mxu0 0.0
    %1095 = vmatpush1.msra.mxu0 0.0
    %1096 = vmatprep.subr.mxu0 0.0
    %1097 = vmatpush1.msra.mxu0 0.0
    %1098 = vmatprep.subr.mxu0 0.0
    %1099 = vmatpush1.msra.mxu0 0.0
    %1100 = vmatprep.subr.mxu0 0.0
    %1101 = vmatpush1.msra.mxu0 0.0
    %1102 = vmatprep.subr.mxu0 0.0
    %1103 = vmatpush1.msra.mxu0 0.0
    %1104 = vmatprep.subr.mxu0 0.0
    %1105 = vmatpush1.msra.mxu0 0.0
    %1106 = vmatprep.subr.mxu0 0.0
    %1107 = vmatpush1.msra.mxu0 0.0
    %1108 = vmatprep.subr.mxu0 0.0
    %1109 = vmatpush1.msra.mxu0 0.0
    %1110 = vmatprep.subr.mxu0 0.0
    %1111 = vmatpush1.msra.mxu0 0.0
    %1112 = vmatprep.mubr.f32.mxu0 0.0
    %1113 = vmatmul.mubr.f32.gmra.mrb[0].mxu0 %v125
    %v1114 = vpop.f32.mrb[0].mxu0
    %v1115 = vadd.f32 0.0, %v1114
    %v1116 = vpop.f32.mrb[0].mxu0
    %1117 = vdwg.mxu0
    %1119 = vrot.lane.b32.xlu0 %v1115, 127
    %v1120 = vpop.permute.xlu0 %1119
    %v1122 = vadd.f32 %v952, %v1120
    %1123 = vmatprep.subr.mxu0 0.0
    %1124 = vmatpush1.msra.mxu0 %v968
    %1125 = vmatprep.subr.mxu0 0.0
    %1126 = vmatpush1.msra.mxu0 0.0
    %1127 = vmatprep.subr.mxu0 0.0
    %1128 = vmatpush1.msra.mxu0 0.0
    %1129 = vmatprep.subr.mxu0 0.0
    %1130 = vmatpush1.msra.mxu0 0.0
    %1131 = vmatprep.subr.mxu0 0.0
    %1132 = vmatpush1.msra.mxu0 0.0
    %1133 = vmatprep.subr.mxu0 0.0
    %1134 = vmatpush1.msra.mxu0 0.0
    %1135 = vmatprep.subr.mxu0 0.0
    %1136 = vmatpush1.msra.mxu0 0.0
    %1137 = vmatprep.subr.mxu0 0.0
    %1138 = vmatpush1.msra.mxu0 0.0
    %1139 = vmatprep.subr.mxu0 0.0
    %1140 = vmatpush1.msra.mxu0 0.0
    %1141 = vmatprep.subr.mxu0 0.0
    %1142 = vmatpush1.msra.mxu0 0.0
    %1143 = vmatprep.subr.mxu0 0.0
    %1144 = vmatpush1.msra.mxu0 0.0
    %1145 = vmatprep.subr.mxu0 0.0
    %1146 = vmatpush1.msra.mxu0 0.0
    %1147 = vmatprep.subr.mxu0 0.0
    %1148 = vmatpush1.msra.mxu0 0.0
    %1149 = vmatprep.subr.mxu0 0.0
    %1150 = vmatpush1.msra.mxu0 0.0
    %1151 = vmatprep.subr.mxu0 0.0
    %1152 = vmatpush1.msra.mxu0 0.0
    %1153 = vmatprep.subr.mxu0 0.0
    %1154 = vmatpush1.msra.mxu0 0.0
    %1155 = vmatprep.subr.mxu0 0.0
    %1156 = vmatpush1.msra.mxu0 0.0
    %1157 = vmatprep.subr.mxu0 0.0
    %1158 = vmatpush1.msra.mxu0 0.0
    %1159 = vmatprep.subr.mxu0 0.0
    %1160 = vmatpush1.msra.mxu0 0.0
    %1161 = vmatprep.subr.mxu0 0.0
    %1162 = vmatpush1.msra.mxu0 0.0
    %1163 = vmatprep.subr.mxu0 0.0
    %1164 = vmatpush1.msra.mxu0 0.0
    %1165 = vmatprep.subr.mxu0 0.0
    %1166 = vmatpush1.msra.mxu0 0.0
    %1167 = vmatprep.subr.mxu0 0.0
    %1168 = vmatpush1.msra.mxu0 0.0
    %1169 = vmatprep.subr.mxu0 0.0
    %1170 = vmatpush1.msra.mxu0 0.0
    %1171 = vmatprep.subr.mxu0 0.0
    %1172 = vmatpush1.msra.mxu0 0.0
    %1173 = vmatprep.subr.mxu0 0.0
    %1174 = vmatpush1.msra.mxu0 0.0
    %1175 = vmatprep.subr.mxu0 0.0
    %1176 = vmatpush1.msra.mxu0 0.0
    %1177 = vmatprep.subr.mxu0 0.0
    %1178 = vmatpush1.msra.mxu0 0.0
    %1179 = vmatprep.subr.mxu0 0.0
    %1180 = vmatpush1.msra.mxu0 0.0
    %1181 = vmatprep.subr.mxu0 0.0
    %1182 = vmatpush1.msra.mxu0 0.0
    %1183 = vmatprep.subr.mxu0 0.0
    %1184 = vmatpush1.msra.mxu0 0.0
    %1185 = vmatprep.subr.mxu0 0.0
    %1186 = vmatpush1.msra.mxu0 0.0
    %1187 = vmatprep.mubr.f32.mxu0 0.0
    %1188 = vmatmul.mubr.f32.gmra.mrb[0].mxu0 %v199
    %v1189 = vpop.f32.mrb[0].mxu0
    %v1190 = vadd.f32 0.0, %v1189
    %v1191 = vpop.f32.mrb[0].mxu0
    %1192 = vdwg.mxu0
    %1193 = vmatprep.subr.mxu0 0.0
    %1194 = vmatpush1.msra.mxu0 %v1046
    %1195 = vmatprep.subr.mxu0 0.0
    %1196 = vmatpush1.msra.mxu0 0.0
    %1197 = vmatprep.subr.mxu0 0.0
    %1198 = vmatpush1.msra.mxu0 0.0
    %1199 = vmatprep.subr.mxu0 0.0
    %1200 = vmatpush1.msra.mxu0 0.0
    %1201 = vmatprep.subr.mxu0 0.0
    %1202 = vmatpush1.msra.mxu0 0.0
    %1203 = vmatprep.subr.mxu0 0.0
    %1204 = vmatpush1.msra.mxu0 0.0
    %1205 = vmatprep.subr.mxu0 0.0
    %1206 = vmatpush1.msra.mxu0 0.0
    %1207 = vmatprep.subr.mxu0 0.0
    %1208 = vmatpush1.msra.mxu0 0.0
    %1209 = vmatprep.subr.mxu0 0.0
    %1210 = vmatpush1.msra.mxu0 0.0
    %1211 = vmatprep.subr.mxu0 0.0
    %1212 = vmatpush1.msra.mxu0 0.0
    %1213 = vmatprep.subr.mxu0 0.0
    %1214 = vmatpush1.msra.mxu0 0.0
    %1215 = vmatprep.subr.mxu0 0.0
    %1216 = vmatpush1.msra.mxu0 0.0
    %1217 = vmatprep.subr.mxu0 0.0
    %1218 = vmatpush1.msra.mxu0 0.0
    %1219 = vmatprep.subr.mxu0 0.0
    %1220 = vmatpush1.msra.mxu0 0.0
    %1221 = vmatprep.subr.mxu0 0.0
    %1222 = vmatpush1.msra.mxu0 0.0
    %1223 = vmatprep.subr.mxu0 0.0
    %1224 = vmatpush1.msra.mxu0 0.0
    %1225 = vmatprep.subr.mxu0 0.0
    %1226 = vmatpush1.msra.mxu0 0.0
    %1227 = vmatprep.subr.mxu0 0.0
    %1228 = vmatpush1.msra.mxu0 0.0
    %1229 = vmatprep.subr.mxu0 0.0
    %1230 = vmatpush1.msra.mxu0 0.0
    %1231 = vmatprep.subr.mxu0 0.0
    %1232 = vmatpush1.msra.mxu0 0.0
    %1233 = vmatprep.subr.mxu0 0.0
    %1234 = vmatpush1.msra.mxu0 0.0
    %1235 = vmatprep.subr.mxu0 0.0
    %1236 = vmatpush1.msra.mxu0 0.0
    %1237 = vmatprep.subr.mxu0 0.0
    %1238 = vmatpush1.msra.mxu0 0.0
    %1239 = vmatprep.subr.mxu0 0.0
    %1240 = vmatpush1.msra.mxu0 0.0
    %1241 = vmatprep.subr.mxu0 0.0
    %1242 = vmatpush1.msra.mxu0 0.0
    %1243 = vmatprep.subr.mxu0 0.0
    %1244 = vmatpush1.msra.mxu0 0.0
    %1245 = vmatprep.subr.mxu0 0.0
    %1246 = vmatpush1.msra.mxu0 0.0
    %1247 = vmatprep.subr.mxu0 0.0
    %1248 = vmatpush1.msra.mxu0 0.0
    %1249 = vmatprep.subr.mxu0 0.0
    %1250 = vmatpush1.msra.mxu0 0.0
    %1251 = vmatprep.subr.mxu0 0.0
    %1252 = vmatpush1.msra.mxu0 0.0
    %1253 = vmatprep.subr.mxu0 0.0
    %1254 = vmatpush1.msra.mxu0 0.0
    %1255 = vmatprep.subr.mxu0 0.0
    %1256 = vmatpush1.msra.mxu0 0.0
    %1257 = vmatprep.mubr.f32.mxu0 0.0
    %1258 = vmatmul.mubr.f32.gmra.mrb[0].mxu0 %v273
    %v1259 = vpop.f32.mrb[0].mxu0
    %v1260 = vadd.f32 0.0, %v1259
    %v1261 = vpop.f32.mrb[0].mxu0
    %1262 = vdwg.mxu0
    %1264 = vset.pattern.permute.xlu0 0
    %1265 = vperm.xlu0 %1264, %v1043
    %v1266 = vpop.permute.xlu0 %1265
    %v1268 = vsel %vm90, %v1266, %v951
    %v1269 = vsel %vm91, %v1266, %v952
    %1271 = vset.pattern.permute.xlu0 127
    %1272 = vperm.xlu0 %1271, %v1122
    %v1273 = vpop.permute.xlu0 %1272
    %v1275 = vsel %vm117, %v1273, %v1268
    %v1276 = vsel %vm118, %v1273, %v1269
    %1278 = vrot.lane.b32.xlu0 %v1190, 1
    %v1279 = vpop.permute.xlu0 %1278
    %v1281 = vadd.f32 %v951, %v1279
    %1283 = vset.pattern.permute.xlu0 1
    %1284 = vperm.xlu0 %1283, %v1281
    %v1285 = vpop.permute.xlu0 %1284
    %v1287 = vsel %vm683, %v1285, %v1275
    %v1288 = vsel %vm684, %v1285, %v1276
    %1290 = vrot.lane.b32.xlu0 %v1260, 126
    %v1291 = vpop.permute.xlu0 %1290
    %v1293 = vadd.f32 %v952, %v1291
    %1295 = vset.pattern.permute.xlu0 126
    %1296 = vperm.xlu0 %1295, %v1293
    %v1297 = vpop.permute.xlu0 %1296
    %v1299 = vsel %vm697, %v1297, %v1287
    %v1300 = vsel %vm698, %v1297, %v1288
    %s1301 = scalar_lea.vmem [#allocation10], 16
    %1302 = vst [vmem:[%s1301] sm:$0xff] %v1299
    %1303 = vst [vmem:[%s1301 + $0x8] sm:$0xff] %v1300
    %s1304 = scalar_lea.vmem [#allocation6], 32
    %v1305 = vld [vmem:[%s1304] sm:$0xff]
    %v1306 = vld [vmem:[%s1304 + $0x8] sm:$0xff]
    %1307 = vrot.lane.b32.xlu0 %v1305, 1
    %v1308 = vpop.permute.xlu0 %1307
    %1309 = vrot.lane.b32.xlu0 %v1306, 1
    %v1310 = vpop.permute.xlu0 %1309
    %v1311 = vsel %vm87, %v1308, %v1310
    %v1312 = vsel %vm87, %v1310, %v1308
    %1313 = vrot.lane.b32.xlu0 %v1305, 127
    %v1314 = vpop.permute.xlu0 %1313
    %1315 = vrot.lane.b32.xlu0 %v1306, 127
    %v1316 = vpop.permute.xlu0 %1315
    %v1317 = vsel %vm110, %v1314, %v1316
    %v1318 = vsel %vm110, %v1316, %v1314
    %v1319 = vsel %vm96, %v1312, %v1317
    %v1320 = vsel %vm97, %v1311, %v1318
    %v1321 = vsel %vm90, 0.0, %v1319
    %v1322 = vsel %vm91, 0.0, %v1320
    %v1323 = vsel %vm96, %v1317, %v1312
    %v1324 = vsel %vm97, %v1318, %v1311
    %v1325 = vsel %vm117, 0.0, %v1323
    %v1326 = vsel %vm118, 0.0, %v1324
    %1327 = vmatprep.subr.mxu0 %v1306
    %1328 = vmatpush1.msra.mxu0 %v1305
    %1329 = vmatprep.subr.mxu0 0.0
    %1330 = vmatpush1.msra.mxu0 0.0
    %1331 = vmatprep.subr.mxu0 0.0
    %1332 = vmatpush1.msra.mxu0 0.0
    %1333 = vmatprep.subr.mxu0 0.0
    %1334 = vmatpush1.msra.mxu0 0.0
    %1335 = vmatprep.subr.mxu0 0.0
    %1336 = vmatpush1.msra.mxu0 0.0
    %1337 = vmatprep.subr.mxu0 0.0
    %1338 = vmatpush1.msra.mxu0 0.0
    %1339 = vmatprep.subr.mxu0 0.0
    %1340 = vmatpush1.msra.mxu0 0.0
    %1341 = vmatprep.subr.mxu0 0.0
    %1342 = vmatpush1.msra.mxu0 0.0
    %1343 = vmatprep.subr.mxu0 0.0
    %1344 = vmatpush1.msra.mxu0 0.0
    %1345 = vmatprep.subr.mxu0 0.0
    %1346 = vmatpush1.msra.mxu0 0.0
    %1347 = vmatprep.subr.mxu0 0.0
    %1348 = vmatpush1.msra.mxu0 0.0
    %1349 = vmatprep.subr.mxu0 0.0
    %1350 = vmatpush1.msra.mxu0 0.0
    %1351 = vmatprep.subr.mxu0 0.0
    %1352 = vmatpush1.msra.mxu0 0.0
    %1353 = vmatprep.subr.mxu0 0.0
    %1354 = vmatpush1.msra.mxu0 0.0
    %1355 = vmatprep.subr.mxu0 0.0
    %1356 = vmatpush1.msra.mxu0 0.0
    %1357 = vmatprep.subr.mxu0 0.0
    %1358 = vmatpush1.msra.mxu0 0.0
    %1359 = vmatprep.subr.mxu0 0.0
    %1360 = vmatpush1.msra.mxu0 0.0
    %1361 = vmatprep.subr.mxu0 0.0
    %1362 = vmatpush1.msra.mxu0 0.0
    %1363 = vmatprep.subr.mxu0 0.0
    %1364 = vmatpush1.msra.mxu0 0.0
    %1365 = vmatprep.subr.mxu0 0.0
    %1366 = vmatpush1.msra.mxu0 0.0
    %1367 = vmatprep.subr.mxu0 0.0
    %1368 = vmatpush1.msra.mxu0 0.0
    %1369 = vmatprep.subr.mxu0 0.0
    %1370 = vmatpush1.msra.mxu0 0.0
    %1371 = vmatprep.subr.mxu0 0.0
    %1372 = vmatpush1.msra.mxu0 0.0
    %1373 = vmatprep.subr.mxu0 0.0
    %1374 = vmatpush1.msra.mxu0 0.0
    %1375 = vmatprep.subr.mxu0 0.0
    %1376 = vmatpush1.msra.mxu0 0.0
    %1377 = vmatprep.subr.mxu0 0.0
    %1378 = vmatpush1.msra.mxu0 0.0
    %1379 = vmatprep.subr.mxu0 0.0
    %1380 = vmatpush1.msra.mxu0 0.0
    %1381 = vmatprep.subr.mxu0 0.0
    %1382 = vmatpush1.msra.mxu0 0.0
    %1383 = vmatprep.subr.mxu0 0.0
    %1384 = vmatpush1.msra.mxu0 0.0
    %1385 = vmatprep.subr.mxu0 0.0
    %1386 = vmatpush1.msra.mxu0 0.0
    %1387 = vmatprep.subr.mxu0 0.0
    %1388 = vmatpush1.msra.mxu0 0.0
    %1389 = vmatprep.subr.mxu0 0.0
    %1390 = vmatpush1.msra.mxu0 0.0
    %1391 = vmatprep.mubr.f32.mxu0 0.0
    %1392 = vmatmul.mubr.f32.gmra.mrb[0].mxu0 %v125
    %v1393 = vpop.f32.mrb[0].mxu0
    %v1394 = vadd.f32 0.0, %v1393
    %v1395 = vpop.f32.mrb[0].mxu0
    %v1396 = vadd.f32 0.0, %v1395
    %1397 = vdwg.mxu0
    %1398 = vmatprep.subr.mxu0 %v1322
    %1399 = vmatpush1.msra.mxu0 %v1321
    %1400 = vmatprep.subr.mxu0 0.0
    %1401 = vmatpush1.msra.mxu0 0.0
    %1402 = vmatprep.subr.mxu0 0.0
    %1403 = vmatpush1.msra.mxu0 0.0
    %1404 = vmatprep.subr.mxu0 0.0
    %1405 = vmatpush1.msra.mxu0 0.0
    %1406 = vmatprep.subr.mxu0 0.0
    %1407 = vmatpush1.msra.mxu0 0.0
    %1408 = vmatprep.subr.mxu0 0.0
    %1409 = vmatpush1.msra.mxu0 0.0
    %1410 = vmatprep.subr.mxu0 0.0
    %1411 = vmatpush1.msra.mxu0 0.0
    %1412 = vmatprep.subr.mxu0 0.0
    %1413 = vmatpush1.msra.mxu0 0.0
    %1414 = vmatprep.subr.mxu0 0.0
    %1415 = vmatpush1.msra.mxu0 0.0
    %1416 = vmatprep.subr.mxu0 0.0
    %1417 = vmatpush1.msra.mxu0 0.0
    %1418 = vmatprep.subr.mxu0 0.0
    %1419 = vmatpush1.msra.mxu0 0.0
    %1420 = vmatprep.subr.mxu0 0.0
    %1421 = vmatpush1.msra.mxu0 0.0
    %1422 = vmatprep.subr.mxu0 0.0
    %1423 = vmatpush1.msra.mxu0 0.0
    %1424 = vmatprep.subr.mxu0 0.0
    %1425 = vmatpush1.msra.mxu0 0.0
    %1426 = vmatprep.subr.mxu0 0.0
    %1427 = vmatpush1.msra.mxu0 0.0
    %1428 = vmatprep.subr.mxu0 0.0
    %1429 = vmatpush1.msra.mxu0 0.0
    %1430 = vmatprep.subr.mxu0 0.0
    %1431 = vmatpush1.msra.mxu0 0.0
    %1432 = vmatprep.subr.mxu0 0.0
    %1433 = vmatpush1.msra.mxu0 0.0
    %1434 = vmatprep.subr.mxu0 0.0
    %1435 = vmatpush1.msra.mxu0 0.0
    %1436 = vmatprep.subr.mxu0 0.0
    %1437 = vmatpush1.msra.mxu0 0.0
    %1438 = vmatprep.subr.mxu0 0.0
    %1439 = vmatpush1.msra.mxu0 0.0
    %1440 = vmatprep.subr.mxu0 0.0
    %1441 = vmatpush1.msra.mxu0 0.0
    %1442 = vmatprep.subr.mxu0 0.0
    %1443 = vmatpush1.msra.mxu0 0.0
    %1444 = vmatprep.subr.mxu0 0.0
    %1445 = vmatpush1.msra.mxu0 0.0
    %1446 = vmatprep.subr.mxu0 0.0
    %1447 = vmatpush1.msra.mxu0 0.0
    %1448 = vmatprep.subr.mxu0 0.0
    %1449 = vmatpush1.msra.mxu0 0.0
    %1450 = vmatprep.subr.mxu0 0.0
    %1451 = vmatpush1.msra.mxu0 0.0
    %1452 = vmatprep.subr.mxu0 0.0
    %1453 = vmatpush1.msra.mxu0 0.0
    %1454 = vmatprep.subr.mxu0 0.0
    %1455 = vmatpush1.msra.mxu0 0.0
    %1456 = vmatprep.subr.mxu0 0.0
    %1457 = vmatpush1.msra.mxu0 0.0
    %1458 = vmatprep.subr.mxu0 0.0
    %1459 = vmatpush1.msra.mxu0 0.0
    %1460 = vmatprep.subr.mxu0 0.0
    %1461 = vmatpush1.msra.mxu0 0.0
    %1462 = vmatprep.mubr.f32.mxu0 0.0
    %1463 = vmatmul.mubr.f32.gmra.mrb[0].mxu0 %v199
    %v1464 = vpop.f32.mrb[0].mxu0
    %v1465 = vadd.f32 %v1394, %v1464
    %v1466 = vpop.f32.mrb[0].mxu0
    %v1467 = vadd.f32 %v1396, %v1466
    %1468 = vdwg.mxu0
    %1469 = vmatprep.subr.mxu0 %v1326
    %1470 = vmatpush1.msra.mxu0 %v1325
    %1471 = vmatprep.subr.mxu0 0.0
    %1472 = vmatpush1.msra.mxu0 0.0
    %1473 = vmatprep.subr.mxu0 0.0
    %1474 = vmatpush1.msra.mxu0 0.0
    %1475 = vmatprep.subr.mxu0 0.0
    %1476 = vmatpush1.msra.mxu0 0.0
    %1477 = vmatprep.subr.mxu0 0.0
    %1478 = vmatpush1.msra.mxu0 0.0
    %1479 = vmatprep.subr.mxu0 0.0
    %1480 = vmatpush1.msra.mxu0 0.0
    %1481 = vmatprep.subr.mxu0 0.0
    %1482 = vmatpush1.msra.mxu0 0.0
    %1483 = vmatprep.subr.mxu0 0.0
    %1484 = vmatpush1.msra.mxu0 0.0
    %1485 = vmatprep.subr.mxu0 0.0
    %1486 = vmatpush1.msra.mxu0 0.0
    %1487 = vmatprep.subr.mxu0 0.0
    %1488 = vmatpush1.msra.mxu0 0.0
    %1489 = vmatprep.subr.mxu0 0.0
    %1490 = vmatpush1.msra.mxu0 0.0
    %1491 = vmatprep.subr.mxu0 0.0
    %1492 = vmatpush1.msra.mxu0 0.0
    %1493 = vmatprep.subr.mxu0 0.0
    %1494 = vmatpush1.msra.mxu0 0.0
    %1495 = vmatprep.subr.mxu0 0.0
    %1496 = vmatpush1.msra.mxu0 0.0
    %1497 = vmatprep.subr.mxu0 0.0
    %1498 = vmatpush1.msra.mxu0 0.0
    %1499 = vmatprep.subr.mxu0 0.0
    %1500 = vmatpush1.msra.mxu0 0.0
    %1501 = vmatprep.subr.mxu0 0.0
    %1502 = vmatpush1.msra.mxu0 0.0
    %1503 = vmatprep.subr.mxu0 0.0
    %1504 = vmatpush1.msra.mxu0 0.0
    %1505 = vmatprep.subr.mxu0 0.0
    %1506 = vmatpush1.msra.mxu0 0.0
    %1507 = vmatprep.subr.mxu0 0.0
    %1508 = vmatpush1.msra.mxu0 0.0
    %1509 = vmatprep.subr.mxu0 0.0
    %1510 = vmatpush1.msra.mxu0 0.0
    %1511 = vmatprep.subr.mxu0 0.0
    %1512 = vmatpush1.msra.mxu0 0.0
    %1513 = vmatprep.subr.mxu0 0.0
    %1514 = vmatpush1.msra.mxu0 0.0
    %1515 = vmatprep.subr.mxu0 0.0
    %1516 = vmatpush1.msra.mxu0 0.0
    %1517 = vmatprep.subr.mxu0 0.0
    %1518 = vmatpush1.msra.mxu0 0.0
    %1519 = vmatprep.subr.mxu0 0.0
    %1520 = vmatpush1.msra.mxu0 0.0
    %1521 = vmatprep.subr.mxu0 0.0
    %1522 = vmatpush1.msra.mxu0 0.0
    %1523 = vmatprep.subr.mxu0 0.0
    %1524 = vmatpush1.msra.mxu0 0.0
    %1525 = vmatprep.subr.mxu0 0.0
    %1526 = vmatpush1.msra.mxu0 0.0
    %1527 = vmatprep.subr.mxu0 0.0
    %1528 = vmatpush1.msra.mxu0 0.0
    %1529 = vmatprep.subr.mxu0 0.0
    %1530 = vmatpush1.msra.mxu0 0.0
    %1531 = vmatprep.subr.mxu0 0.0
    %1532 = vmatpush1.msra.mxu0 0.0
    %1533 = vmatprep.mubr.f32.mxu0 0.0
    %1534 = vmatmul.mubr.f32.gmra.mrb[0].mxu0 %v273
    %v1535 = vpop.f32.mrb[0].mxu0
    %v1536 = vadd.f32 0.0, %v1535
    %v1537 = vpop.f32.mrb[0].mxu0
    %v1538 = vadd.f32 0.0, %v1537
    %1539 = vdwg.mxu0
    %v1540 = vadd.f32 %v1465, %v1536
    %v1541 = vadd.f32 %v1467, %v1538
    %v1542 = vadd.f32 %v1540, %v351
    %v1543 = vadd.f32 %v1541, %v351
    %v1544 = vmul.f32 %v1305, 2.0
    %v1545 = vmul.f32 %v1543, %v356
    %1547 = vrot.lane.b32.xlu0 %v1545, 1
    %v1548 = vpop.permute.xlu0 %1547
    %v1550 = vsub.f32 %v1542, %v1548
    %v1551 = vmul.f32 %v363, %v1306
    %1553 = vrot.lane.b32.xlu0 %v1551, 1
    %v1554 = vpop.permute.xlu0 %1553
    %v1556 = vadd.f32 %v1550, %v1554
    %v1557 = vmul.f32 %v370, %v1556
    %v1558 = vsub.f32 %v1544, %v1557
    %v1559 = vsub.f32 %v1558, %v1305
    %v1560 = vmul.f32 %v1306, 2.0
    %v1561 = vmul.f32 %v1543, %v375
    %v1562 = vsub.f32 %v1560, %v1561
    %v1563 = vsub.f32 %v1562, %v1306
    %1564 = vmatprep.subr.mxu0 0.0
    %1565 = vmatpush1.msra.mxu0 %v1559
    %1566 = vmatprep.subr.mxu0 0.0
    %1567 = vmatpush1.msra.mxu0 0.0
    %1568 = vmatprep.subr.mxu0 0.0
    %1569 = vmatpush1.msra.mxu0 0.0
    %1570 = vmatprep.subr.mxu0 0.0
    %1571 = vmatpush1.msra.mxu0 0.0
    %1572 = vmatprep.subr.mxu0 0.0
    %1573 = vmatpush1.msra.mxu0 0.0
    %1574 = vmatprep.subr.mxu0 0.0
    %1575 = vmatpush1.msra.mxu0 0.0
    %1576 = vmatprep.subr.mxu0 0.0
    %1577 = vmatpush1.msra.mxu0 0.0
    %1578 = vmatprep.subr.mxu0 0.0
    %1579 = vmatpush1.msra.mxu0 0.0
    %1580 = vmatprep.subr.mxu0 0.0
    %1581 = vmatpush1.msra.mxu0 0.0
    %1582 = vmatprep.subr.mxu0 0.0
    %1583 = vmatpush1.msra.mxu0 0.0
    %1584 = vmatprep.subr.mxu0 0.0
    %1585 = vmatpush1.msra.mxu0 0.0
    %1586 = vmatprep.subr.mxu0 0.0
    %1587 = vmatpush1.msra.mxu0 0.0
    %1588 = vmatprep.subr.mxu0 0.0
    %1589 = vmatpush1.msra.mxu0 0.0
    %1590 = vmatprep.subr.mxu0 0.0
    %1591 = vmatpush1.msra.mxu0 0.0
    %1592 = vmatprep.subr.mxu0 0.0
    %1593 = vmatpush1.msra.mxu0 0.0
    %1594 = vmatprep.subr.mxu0 0.0
    %1595 = vmatpush1.msra.mxu0 0.0
    %1596 = vmatprep.subr.mxu0 0.0
    %1597 = vmatpush1.msra.mxu0 0.0
    %1598 = vmatprep.subr.mxu0 0.0
    %1599 = vmatpush1.msra.mxu0 0.0
    %1600 = vmatprep.subr.mxu0 0.0
    %1601 = vmatpush1.msra.mxu0 0.0
    %1602 = vmatprep.subr.mxu0 0.0
    %1603 = vmatpush1.msra.mxu0 0.0
    %1604 = vmatprep.subr.mxu0 0.0
    %1605 = vmatpush1.msra.mxu0 0.0
    %1606 = vmatprep.subr.mxu0 0.0
    %1607 = vmatpush1.msra.mxu0 0.0
    %1608 = vmatprep.subr.mxu0 0.0
    %1609 = vmatpush1.msra.mxu0 0.0
    %1610 = vmatprep.subr.mxu0 0.0
    %1611 = vmatpush1.msra.mxu0 0.0
    %1612 = vmatprep.subr.mxu0 0.0
    %1613 = vmatpush1.msra.mxu0 0.0
    %1614 = vmatprep.subr.mxu0 0.0
    %1615 = vmatpush1.msra.mxu0 0.0
    %1616 = vmatprep.subr.mxu0 0.0
    %1617 = vmatpush1.msra.mxu0 0.0
    %1618 = vmatprep.subr.mxu0 0.0
    %1619 = vmatpush1.msra.mxu0 0.0
    %1620 = vmatprep.subr.mxu0 0.0
    %1621 = vmatpush1.msra.mxu0 0.0
    %1622 = vmatprep.subr.mxu0 0.0
    %1623 = vmatpush1.msra.mxu0 0.0
    %1624 = vmatprep.subr.mxu0 0.0
    %1625 = vmatpush1.msra.mxu0 0.0
    %1626 = vmatprep.subr.mxu0 0.0
    %1627 = vmatpush1.msra.mxu0 0.0
    %1628 = vmatprep.mubr.f32.mxu0 0.0
    %1629 = vmatmul.mubr.f32.gmra.mrb[0].mxu0 %v125
    %v1630 = vpop.f32.mrb[0].mxu0
    %v1631 = vadd.f32 0.0, %v1630
    %v1632 = vpop.f32.mrb[0].mxu0
    %1633 = vdwg.mxu0
    %v1634 = vadd.f32 %v1542, %v1631
    %1636 = vrot.lane.b32.xlu0 %v1563, 1
    %v1637 = vpop.permute.xlu0 %1636
    %1639 = vmatprep.subr.mxu0 0.0
    %1640 = vmatpush1.msra.mxu0 %v1637
    %1641 = vmatprep.subr.mxu0 0.0
    %1642 = vmatpush1.msra.mxu0 0.0
    %1643 = vmatprep.subr.mxu0 0.0
    %1644 = vmatpush1.msra.mxu0 0.0
    %1645 = vmatprep.subr.mxu0 0.0
    %1646 = vmatpush1.msra.mxu0 0.0
    %1647 = vmatprep.subr.mxu0 0.0
    %1648 = vmatpush1.msra.mxu0 0.0
    %1649 = vmatprep.subr.mxu0 0.0
    %1650 = vmatpush1.msra.mxu0 0.0
    %1651 = vmatprep.subr.mxu0 0.0
    %1652 = vmatpush1.msra.mxu0 0.0
    %1653 = vmatprep.subr.mxu0 0.0
    %1654 = vmatpush1.msra.mxu0 0.0
    %1655 = vmatprep.subr.mxu0 0.0
    %1656 = vmatpush1.msra.mxu0 0.0
    %1657 = vmatprep.subr.mxu0 0.0
    %1658 = vmatpush1.msra.mxu0 0.0
    %1659 = vmatprep.subr.mxu0 0.0
    %1660 = vmatpush1.msra.mxu0 0.0
    %1661 = vmatprep.subr.mxu0 0.0
    %1662 = vmatpush1.msra.mxu0 0.0
    %1663 = vmatprep.subr.mxu0 0.0
    %1664 = vmatpush1.msra.mxu0 0.0
    %1665 = vmatprep.subr.mxu0 0.0
    %1666 = vmatpush1.msra.mxu0 0.0
    %1667 = vmatprep.subr.mxu0 0.0
    %1668 = vmatpush1.msra.mxu0 0.0
    %1669 = vmatprep.subr.mxu0 0.0
    %1670 = vmatpush1.msra.mxu0 0.0
    %1671 = vmatprep.subr.mxu0 0.0
    %1672 = vmatpush1.msra.mxu0 0.0
    %1673 = vmatprep.subr.mxu0 0.0
    %1674 = vmatpush1.msra.mxu0 0.0
    %1675 = vmatprep.subr.mxu0 0.0
    %1676 = vmatpush1.msra.mxu0 0.0
    %1677 = vmatprep.subr.mxu0 0.0
    %1678 = vmatpush1.msra.mxu0 0.0
    %1679 = vmatprep.subr.mxu0 0.0
    %1680 = vmatpush1.msra.mxu0 0.0
    %1681 = vmatprep.subr.mxu0 0.0
    %1682 = vmatpush1.msra.mxu0 0.0
    %1683 = vmatprep.subr.mxu0 0.0
    %1684 = vmatpush1.msra.mxu0 0.0
    %1685 = vmatprep.subr.mxu0 0.0
    %1686 = vmatpush1.msra.mxu0 0.0
    %1687 = vmatprep.subr.mxu0 0.0
    %1688 = vmatpush1.msra.mxu0 0.0
    %1689 = vmatprep.subr.mxu0 0.0
    %1690 = vmatpush1.msra.mxu0 0.0
    %1691 = vmatprep.subr.mxu0 0.0
    %1692 = vmatpush1.msra.mxu0 0.0
    %1693 = vmatprep.subr.mxu0 0.0
    %1694 = vmatpush1.msra.mxu0 0.0
    %1695 = vmatprep.subr.mxu0 0.0
    %1696 = vmatpush1.msra.mxu0 0.0
    %1697 = vmatprep.subr.mxu0 0.0
    %1698 = vmatpush1.msra.mxu0 0.0
    %1699 = vmatprep.subr.mxu0 0.0
    %1700 = vmatpush1.msra.mxu0 0.0
    %1701 = vmatprep.subr.mxu0 0.0
    %1702 = vmatpush1.msra.mxu0 0.0
    %1703 = vmatprep.mubr.f32.mxu0 0.0
    %1704 = vmatmul.mubr.f32.gmra.mrb[0].mxu0 %v125
    %v1705 = vpop.f32.mrb[0].mxu0
    %v1706 = vadd.f32 0.0, %v1705
    %v1707 = vpop.f32.mrb[0].mxu0
    %1708 = vdwg.mxu0
    %1710 = vrot.lane.b32.xlu0 %v1706, 127
    %v1711 = vpop.permute.xlu0 %1710
    %v1713 = vadd.f32 %v1543, %v1711
    %1714 = vmatprep.subr.mxu0 0.0
    %1715 = vmatpush1.msra.mxu0 %v1559
    %1716 = vmatprep.subr.mxu0 0.0
    %1717 = vmatpush1.msra.mxu0 0.0
    %1718 = vmatprep.subr.mxu0 0.0
    %1719 = vmatpush1.msra.mxu0 0.0
    %1720 = vmatprep.subr.mxu0 0.0
    %1721 = vmatpush1.msra.mxu0 0.0
    %1722 = vmatprep.subr.mxu0 0.0
    %1723 = vmatpush1.msra.mxu0 0.0
    %1724 = vmatprep.subr.mxu0 0.0
    %1725 = vmatpush1.msra.mxu0 0.0
    %1726 = vmatprep.subr.mxu0 0.0
    %1727 = vmatpush1.msra.mxu0 0.0
    %1728 = vmatprep.subr.mxu0 0.0
    %1729 = vmatpush1.msra.mxu0 0.0
    %1730 = vmatprep.subr.mxu0 0.0
    %1731 = vmatpush1.msra.mxu0 0.0
    %1732 = vmatprep.subr.mxu0 0.0
    %1733 = vmatpush1.msra.mxu0 0.0
    %1734 = vmatprep.subr.mxu0 0.0
    %1735 = vmatpush1.msra.mxu0 0.0
    %1736 = vmatprep.subr.mxu0 0.0
    %1737 = vmatpush1.msra.mxu0 0.0
    %1738 = vmatprep.subr.mxu0 0.0
    %1739 = vmatpush1.msra.mxu0 0.0
    %1740 = vmatprep.subr.mxu0 0.0
    %1741 = vmatpush1.msra.mxu0 0.0
    %1742 = vmatprep.subr.mxu0 0.0
    %1743 = vmatpush1.msra.mxu0 0.0
    %1744 = vmatprep.subr.mxu0 0.0
    %1745 = vmatpush1.msra.mxu0 0.0
    %1746 = vmatprep.subr.mxu0 0.0
    %1747 = vmatpush1.msra.mxu0 0.0
    %1748 = vmatprep.subr.mxu0 0.0
    %1749 = vmatpush1.msra.mxu0 0.0
    %1750 = vmatprep.subr.mxu0 0.0
    %1751 = vmatpush1.msra.mxu0 0.0
    %1752 = vmatprep.subr.mxu0 0.0
    %1753 = vmatpush1.msra.mxu0 0.0
    %1754 = vmatprep.subr.mxu0 0.0
    %1755 = vmatpush1.msra.mxu0 0.0
    %1756 = vmatprep.subr.mxu0 0.0
    %1757 = vmatpush1.msra.mxu0 0.0
    %1758 = vmatprep.subr.mxu0 0.0
    %1759 = vmatpush1.msra.mxu0 0.0
    %1760 = vmatprep.subr.mxu0 0.0
    %1761 = vmatpush1.msra.mxu0 0.0
    %1762 = vmatprep.subr.mxu0 0.0
    %1763 = vmatpush1.msra.mxu0 0.0
    %1764 = vmatprep.subr.mxu0 0.0
    %1765 = vmatpush1.msra.mxu0 0.0
    %1766 = vmatprep.subr.mxu0 0.0
    %1767 = vmatpush1.msra.mxu0 0.0
    %1768 = vmatprep.subr.mxu0 0.0
    %1769 = vmatpush1.msra.mxu0 0.0
    %1770 = vmatprep.subr.mxu0 0.0
    %1771 = vmatpush1.msra.mxu0 0.0
    %1772 = vmatprep.subr.mxu0 0.0
    %1773 = vmatpush1.msra.mxu0 0.0
    %1774 = vmatprep.subr.mxu0 0.0
    %1775 = vmatpush1.msra.mxu0 0.0
    %1776 = vmatprep.subr.mxu0 0.0
    %1777 = vmatpush1.msra.mxu0 0.0
    %1778 = vmatprep.mubr.f32.mxu0 0.0
    %1779 = vmatmul.mubr.f32.gmra.mrb[0].mxu0 %v199
    %v1780 = vpop.f32.mrb[0].mxu0
    %v1781 = vadd.f32 0.0, %v1780
    %v1782 = vpop.f32.mrb[0].mxu0
    %1783 = vdwg.mxu0
    %1784 = vmatprep.subr.mxu0 0.0
    %1785 = vmatpush1.msra.mxu0 %v1637
    %1786 = vmatprep.subr.mxu0 0.0
    %1787 = vmatpush1.msra.mxu0 0.0
    %1788 = vmatprep.subr.mxu0 0.0
    %1789 = vmatpush1.msra.mxu0 0.0
    %1790 = vmatprep.subr.mxu0 0.0
    %1791 = vmatpush1.msra.mxu0 0.0
    %1792 = vmatprep.subr.mxu0 0.0
    %1793 = vmatpush1.msra.mxu0 0.0
    %1794 = vmatprep.subr.mxu0 0.0
    %1795 = vmatpush1.msra.mxu0 0.0
    %1796 = vmatprep.subr.mxu0 0.0
    %1797 = vmatpush1.msra.mxu0 0.0
    %1798 = vmatprep.subr.mxu0 0.0
    %1799 = vmatpush1.msra.mxu0 0.0
    %1800 = vmatprep.subr.mxu0 0.0
    %1801 = vmatpush1.msra.mxu0 0.0
    %1802 = vmatprep.subr.mxu0 0.0
    %1803 = vmatpush1.msra.mxu0 0.0
    %1804 = vmatprep.subr.mxu0 0.0
    %1805 = vmatpush1.msra.mxu0 0.0
    %1806 = vmatprep.subr.mxu0 0.0
    %1807 = vmatpush1.msra.mxu0 0.0
    %1808 = vmatprep.subr.mxu0 0.0
    %1809 = vmatpush1.msra.mxu0 0.0
    %1810 = vmatprep.subr.mxu0 0.0
    %1811 = vmatpush1.msra.mxu0 0.0
    %1812 = vmatprep.subr.mxu0 0.0
    %1813 = vmatpush1.msra.mxu0 0.0
    %1814 = vmatprep.subr.mxu0 0.0
    %1815 = vmatpush1.msra.mxu0 0.0
    %1816 = vmatprep.subr.mxu0 0.0
    %1817 = vmatpush1.msra.mxu0 0.0
    %1818 = vmatprep.subr.mxu0 0.0
    %1819 = vmatpush1.msra.mxu0 0.0
    %1820 = vmatprep.subr.mxu0 0.0
    %1821 = vmatpush1.msra.mxu0 0.0
    %1822 = vmatprep.subr.mxu0 0.0
    %1823 = vmatpush1.msra.mxu0 0.0
    %1824 = vmatprep.subr.mxu0 0.0
    %1825 = vmatpush1.msra.mxu0 0.0
    %1826 = vmatprep.subr.mxu0 0.0
    %1827 = vmatpush1.msra.mxu0 0.0
    %1828 = vmatprep.subr.mxu0 0.0
    %1829 = vmatpush1.msra.mxu0 0.0
    %1830 = vmatprep.subr.mxu0 0.0
    %1831 = vmatpush1.msra.mxu0 0.0
    %1832 = vmatprep.subr.mxu0 0.0
    %1833 = vmatpush1.msra.mxu0 0.0
    %1834 = vmatprep.subr.mxu0 0.0
    %1835 = vmatpush1.msra.mxu0 0.0
    %1836 = vmatprep.subr.mxu0 0.0
    %1837 = vmatpush1.msra.mxu0 0.0
    %1838 = vmatprep.subr.mxu0 0.0
    %1839 = vmatpush1.msra.mxu0 0.0
    %1840 = vmatprep.subr.mxu0 0.0
    %1841 = vmatpush1.msra.mxu0 0.0
    %1842 = vmatprep.subr.mxu0 0.0
    %1843 = vmatpush1.msra.mxu0 0.0
    %1844 = vmatprep.subr.mxu0 0.0
    %1845 = vmatpush1.msra.mxu0 0.0
    %1846 = vmatprep.subr.mxu0 0.0
    %1847 = vmatpush1.msra.mxu0 0.0
    %1848 = vmatprep.mubr.f32.mxu0 0.0
    %1849 = vmatmul.mubr.f32.gmra.mrb[0].mxu0 %v273
    %v1850 = vpop.f32.mrb[0].mxu0
    %v1851 = vadd.f32 0.0, %v1850
    %v1852 = vpop.f32.mrb[0].mxu0
    %1853 = vdwg.mxu0
    %1855 = vset.pattern.permute.xlu0 0
    %1856 = vperm.xlu0 %1855, %v1634
    %v1857 = vpop.permute.xlu0 %1856
    %v1859 = vsel %vm90, %v1857, %v1542
    %v1860 = vsel %vm91, %v1857, %v1543
    %1862 = vset.pattern.permute.xlu0 127
    %1863 = vperm.xlu0 %1862, %v1713
    %v1864 = vpop.permute.xlu0 %1863
    %v1866 = vsel %vm117, %v1864, %v1859
    %v1867 = vsel %vm118, %v1864, %v1860
    %1869 = vrot.lane.b32.xlu0 %v1781, 1
    %v1870 = vpop.permute.xlu0 %1869
    %v1872 = vadd.f32 %v1542, %v1870
    %1874 = vset.pattern.permute.xlu0 1
    %1875 = vperm.xlu0 %1874, %v1872
    %v1876 = vpop.permute.xlu0 %1875
    %v1878 = vsel %vm683, %v1876, %v1866
    %v1879 = vsel %vm684, %v1876, %v1867
    %1881 = vrot.lane.b32.xlu0 %v1851, 126
    %v1882 = vpop.permute.xlu0 %1881
    %v1884 = vadd.f32 %v1543, %v1882
    %1886 = vset.pattern.permute.xlu0 126
    %1887 = vperm.xlu0 %1886, %v1884
    %v1888 = vpop.permute.xlu0 %1887
    %v1890 = vsel %vm697, %v1888, %v1878
    %v1891 = vsel %vm698, %v1888, %v1879
    %s1892 = scalar_lea.vmem [#allocation10], 32
    %1893 = vst [vmem:[%s1892] sm:$0xff] %v1890
    %1894 = vst [vmem:[%s1892 + $0x8] sm:$0xff] %v1891
    %s1895 = scalar_lea.vmem [#allocation6], 48
    %v1896 = vld [vmem:[%s1895] sm:$0xff]
    %v1897 = vld [vmem:[%s1895 + $0x8] sm:$0xff]
    %1898 = vrot.lane.b32.xlu0 %v1896, 1
    %v1899 = vpop.permute.xlu0 %1898
    %1900 = vrot.lane.b32.xlu0 %v1897, 1
    %v1901 = vpop.permute.xlu0 %1900
    %v1902 = vsel %vm87, %v1899, %v1901
    %v1903 = vsel %vm87, %v1901, %v1899
    %1904 = vrot.lane.b32.xlu0 %v1896, 127
    %v1905 = vpop.permute.xlu0 %1904
    %1906 = vrot.lane.b32.xlu0 %v1897, 127
    %v1907 = vpop.permute.xlu0 %1906
    %v1908 = vsel %vm110, %v1905, %v1907
    %v1909 = vsel %vm110, %v1907, %v1905
    %v1910 = vsel %vm96, %v1903, %v1908
    %v1911 = vsel %vm97, %v1902, %v1909
    %v1912 = vsel %vm90, 0.0, %v1910
    %v1913 = vsel %vm91, 0.0, %v1911
    %v1914 = vsel %vm96, %v1908, %v1903
    %v1915 = vsel %vm97, %v1909, %v1902
    %v1916 = vsel %vm117, 0.0, %v1914
    %v1917 = vsel %vm118, 0.0, %v1915
    %1918 = vmatprep.subr.mxu0 %v1897
    %1919 = vmatpush1.msra.mxu0 %v1896
    %1920 = vmatprep.subr.mxu0 0.0
    %1921 = vmatpush1.msra.mxu0 0.0
    %1922 = vmatprep.subr.mxu0 0.0
    %1923 = vmatpush1.msra.mxu0 0.0
    %1924 = vmatprep.subr.mxu0 0.0
    %1925 = vmatpush1.msra.mxu0 0.0
    %1926 = vmatprep.subr.mxu0 0.0
    %1927 = vmatpush1.msra.mxu0 0.0
    %1928 = vmatprep.subr.mxu0 0.0
    %1929 = vmatpush1.msra.mxu0 0.0
    %1930 = vmatprep.subr.mxu0 0.0
    %1931 = vmatpush1.msra.mxu0 0.0
    %1932 = vmatprep.subr.mxu0 0.0
    %1933 = vmatpush1.msra.mxu0 0.0
    %1934 = vmatprep.subr.mxu0 0.0
    %1935 = vmatpush1.msra.mxu0 0.0
    %1936 = vmatprep.subr.mxu0 0.0
    %1937 = vmatpush1.msra.mxu0 0.0
    %1938 = vmatprep.subr.mxu0 0.0
    %1939 = vmatpush1.msra.mxu0 0.0
    %1940 = vmatprep.subr.mxu0 0.0
    %1941 = vmatpush1.msra.mxu0 0.0
    %1942 = vmatprep.subr.mxu0 0.0
    %1943 = vmatpush1.msra.mxu0 0.0
    %1944 = vmatprep.subr.mxu0 0.0
    %1945 = vmatpush1.msra.mxu0 0.0
    %1946 = vmatprep.subr.mxu0 0.0
    %1947 = vmatpush1.msra.mxu0 0.0
    %1948 = vmatprep.subr.mxu0 0.0
    %1949 = vmatpush1.msra.mxu0 0.0
    %1950 = vmatprep.subr.mxu0 0.0
    %1951 = vmatpush1.msra.mxu0 0.0
    %1952 = vmatprep.subr.mxu0 0.0
    %1953 = vmatpush1.msra.mxu0 0.0
    %1954 = vmatprep.subr.mxu0 0.0
    %1955 = vmatpush1.msra.mxu0 0.0
    %1956 = vmatprep.subr.mxu0 0.0
    %1957 = vmatpush1.msra.mxu0 0.0
    %1958 = vmatprep.subr.mxu0 0.0
    %1959 = vmatpush1.msra.mxu0 0.0
    %1960 = vmatprep.subr.mxu0 0.0
    %1961 = vmatpush1.msra.mxu0 0.0
    %1962 = vmatprep.subr.mxu0 0.0
    %1963 = vmatpush1.msra.mxu0 0.0
    %1964 = vmatprep.subr.mxu0 0.0
    %1965 = vmatpush1.msra.mxu0 0.0
    %1966 = vmatprep.subr.mxu0 0.0
    %1967 = vmatpush1.msra.mxu0 0.0
    %1968 = vmatprep.subr.mxu0 0.0
    %1969 = vmatpush1.msra.mxu0 0.0
    %1970 = vmatprep.subr.mxu0 0.0
    %1971 = vmatpush1.msra.mxu0 0.0
    %1972 = vmatprep.subr.mxu0 0.0
    %1973 = vmatpush1.msra.mxu0 0.0
    %1974 = vmatprep.subr.mxu0 0.0
    %1975 = vmatpush1.msra.mxu0 0.0
    %1976 = vmatprep.subr.mxu0 0.0
    %1977 = vmatpush1.msra.mxu0 0.0
    %1978 = vmatprep.subr.mxu0 0.0
    %1979 = vmatpush1.msra.mxu0 0.0
    %1980 = vmatprep.subr.mxu0 0.0
    %1981 = vmatpush1.msra.mxu0 0.0
    %1982 = vmatprep.mubr.f32.mxu0 0.0
    %1983 = vmatmul.mubr.f32.gmra.mrb[0].mxu0 %v125
    %v1984 = vpop.f32.mrb[0].mxu0
    %v1985 = vadd.f32 0.0, %v1984
    %v1986 = vpop.f32.mrb[0].mxu0
    %v1987 = vadd.f32 0.0, %v1986
    %1988 = vdwg.mxu0
    %1989 = vmatprep.subr.mxu0 %v1913
    %1990 = vmatpush1.msra.mxu0 %v1912
    %1991 = vmatprep.subr.mxu0 0.0
    %1992 = vmatpush1.msra.mxu0 0.0
    %1993 = vmatprep.subr.mxu0 0.0
    %1994 = vmatpush1.msra.mxu0 0.0
    %1995 = vmatprep.subr.mxu0 0.0
    %1996 = vmatpush1.msra.mxu0 0.0
    %1997 = vmatprep.subr.mxu0 0.0
    %1998 = vmatpush1.msra.mxu0 0.0
    %1999 = vmatprep.subr.mxu0 0.0
    %2000 = vmatpush1.msra.mxu0 0.0
    %2001 = vmatprep.subr.mxu0 0.0
    %2002 = vmatpush1.msra.mxu0 0.0
    %2003 = vmatprep.subr.mxu0 0.0
    %2004 = vmatpush1.msra.mxu0 0.0
    %2005 = vmatprep.subr.mxu0 0.0
    %2006 = vmatpush1.msra.mxu0 0.0
    %2007 = vmatprep.subr.mxu0 0.0
    %2008 = vmatpush1.msra.mxu0 0.0
    %2009 = vmatprep.subr.mxu0 0.0
    %2010 = vmatpush1.msra.mxu0 0.0
    %2011 = vmatprep.subr.mxu0 0.0
    %2012 = vmatpush1.msra.mxu0 0.0
    %2013 = vmatprep.subr.mxu0 0.0
    %2014 = vmatpush1.msra.mxu0 0.0
    %2015 = vmatprep.subr.mxu0 0.0
    %2016 = vmatpush1.msra.mxu0 0.0
    %2017 = vmatprep.subr.mxu0 0.0
    %2018 = vmatpush1.msra.mxu0 0.0
    %2019 = vmatprep.subr.mxu0 0.0
    %2020 = vmatpush1.msra.mxu0 0.0
    %2021 = vmatprep.subr.mxu0 0.0
    %2022 = vmatpush1.msra.mxu0 0.0
    %2023 = vmatprep.subr.mxu0 0.0
    %2024 = vmatpush1.msra.mxu0 0.0
    %2025 = vmatprep.subr.mxu0 0.0
    %2026 = vmatpush1.msra.mxu0 0.0
    %2027 = vmatprep.subr.mxu0 0.0
    %2028 = vmatpush1.msra.mxu0 0.0
    %2029 = vmatprep.subr.mxu0 0.0
    %2030 = vmatpush1.msra.mxu0 0.0
    %2031 = vmatprep.subr.mxu0 0.0
    %2032 = vmatpush1.msra.mxu0 0.0
    %2033 = vmatprep.subr.mxu0 0.0
    %2034 = vmatpush1.msra.mxu0 0.0
    %2035 = vmatprep.subr.mxu0 0.0
    %2036 = vmatpush1.msra.mxu0 0.0
    %2037 = vmatprep.subr.mxu0 0.0
    %2038 = vmatpush1.msra.mxu0 0.0
    %2039 = vmatprep.subr.mxu0 0.0
    %2040 = vmatpush1.msra.mxu0 0.0
    %2041 = vmatprep.subr.mxu0 0.0
    %2042 = vmatpush1.msra.mxu0 0.0
    %2043 = vmatprep.subr.mxu0 0.0
    %2044 = vmatpush1.msra.mxu0 0.0
    %2045 = vmatprep.subr.mxu0 0.0
    %2046 = vmatpush1.msra.mxu0 0.0
    %2047 = vmatprep.subr.mxu0 0.0
    %2048 = vmatpush1.msra.mxu0 0.0
    %2049 = vmatprep.subr.mxu0 0.0
    %2050 = vmatpush1.msra.mxu0 0.0
    %2051 = vmatprep.subr.mxu0 0.0
    %2052 = vmatpush1.msra.mxu0 0.0
    %2053 = vmatprep.mubr.f32.mxu0 0.0
    %2054 = vmatmul.mubr.f32.gmra.mrb[0].mxu0 %v199
    %v2055 = vpop.f32.mrb[0].mxu0
    %v2056 = vadd.f32 %v1985, %v2055
    %v2057 = vpop.f32.mrb[0].mxu0
    %v2058 = vadd.f32 %v1987, %v2057
    %2059 = vdwg.mxu0
    %2060 = vmatprep.subr.mxu0 %v1917
    %2061 = vmatpush1.msra.mxu0 %v1916
    %2062 = vmatprep.subr.mxu0 0.0
    %2063 = vmatpush1.msra.mxu0 0.0
    %2064 = vmatprep.subr.mxu0 0.0
    %2065 = vmatpush1.msra.mxu0 0.0
    %2066 = vmatprep.subr.mxu0 0.0
    %2067 = vmatpush1.msra.mxu0 0.0
    %2068 = vmatprep.subr.mxu0 0.0
    %2069 = vmatpush1.msra.mxu0 0.0
    %2070 = vmatprep.subr.mxu0 0.0
    %2071 = vmatpush1.msra.mxu0 0.0
    %2072 = vmatprep.subr.mxu0 0.0
    %2073 = vmatpush1.msra.mxu0 0.0
    %2074 = vmatprep.subr.mxu0 0.0
    %2075 = vmatpush1.msra.mxu0 0.0
    %2076 = vmatprep.subr.mxu0 0.0
    %2077 = vmatpush1.msra.mxu0 0.0
    %2078 = vmatprep.subr.mxu0 0.0
    %2079 = vmatpush1.msra.mxu0 0.0
    %2080 = vmatprep.subr.mxu0 0.0
    %2081 = vmatpush1.msra.mxu0 0.0
    %2082 = vmatprep.subr.mxu0 0.0
    %2083 = vmatpush1.msra.mxu0 0.0
    %2084 = vmatprep.subr.mxu0 0.0
    %2085 = vmatpush1.msra.mxu0 0.0
    %2086 = vmatprep.subr.mxu0 0.0
    %2087 = vmatpush1.msra.mxu0 0.0
    %2088 = vmatprep.subr.mxu0 0.0
    %2089 = vmatpush1.msra.mxu0 0.0
    %2090 = vmatprep.subr.mxu0 0.0
    %2091 = vmatpush1.msra.mxu0 0.0
    %2092 = vmatprep.subr.mxu0 0.0
    %2093 = vmatpush1.msra.mxu0 0.0
    %2094 = vmatprep.subr.mxu0 0.0
    %2095 = vmatpush1.msra.mxu0 0.0
    %2096 = vmatprep.subr.mxu0 0.0
    %2097 = vmatpush1.msra.mxu0 0.0
    %2098 = vmatprep.subr.mxu0 0.0
    %2099 = vmatpush1.msra.mxu0 0.0
    %2100 = vmatprep.subr.mxu0 0.0
    %2101 = vmatpush1.msra.mxu0 0.0
    %2102 = vmatprep.subr.mxu0 0.0
    %2103 = vmatpush1.msra.mxu0 0.0
    %2104 = vmatprep.subr.mxu0 0.0
    %2105 = vmatpush1.msra.mxu0 0.0
    %2106 = vmatprep.subr.mxu0 0.0
    %2107 = vmatpush1.msra.mxu0 0.0
    %2108 = vmatprep.subr.mxu0 0.0
    %2109 = vmatpush1.msra.mxu0 0.0
    %2110 = vmatprep.subr.mxu0 0.0
    %2111 = vmatpush1.msra.mxu0 0.0
    %2112 = vmatprep.subr.mxu0 0.0
    %2113 = vmatpush1.msra.mxu0 0.0
    %2114 = vmatprep.subr.mxu0 0.0
    %2115 = vmatpush1.msra.mxu0 0.0
    %2116 = vmatprep.subr.mxu0 0.0
    %2117 = vmatpush1.msra.mxu0 0.0
    %2118 = vmatprep.subr.mxu0 0.0
    %2119 = vmatpush1.msra.mxu0 0.0
    %2120 = vmatprep.subr.mxu0 0.0
    %2121 = vmatpush1.msra.mxu0 0.0
    %2122 = vmatprep.subr.mxu0 0.0
    %2123 = vmatpush1.msra.mxu0 0.0
    %2124 = vmatprep.mubr.f32.mxu0 0.0
    %2125 = vmatmul.mubr.f32.gmra.mrb[0].mxu0 %v273
    %v2126 = vpop.f32.mrb[0].mxu0
    %v2127 = vadd.f32 0.0, %v2126
    %v2128 = vpop.f32.mrb[0].mxu0
    %v2129 = vadd.f32 0.0, %v2128
    %2130 = vdwg.mxu0
    %v2131 = vadd.f32 %v2056, %v2127
    %v2132 = vadd.f32 %v2058, %v2129
    %v2133 = vadd.f32 %v2131, %v351
    %v2134 = vadd.f32 %v2132, %v351
    %v2135 = vmul.f32 %v1896, 2.0
    %v2136 = vmul.f32 %v2134, %v356
    %2138 = vrot.lane.b32.xlu0 %v2136, 1
    %v2139 = vpop.permute.xlu0 %2138
    %v2141 = vsub.f32 %v2133, %v2139
    %v2142 = vmul.f32 %v363, %v1897
    %2144 = vrot.lane.b32.xlu0 %v2142, 1
    %v2145 = vpop.permute.xlu0 %2144
    %v2147 = vadd.f32 %v2141, %v2145
    %v2148 = vmul.f32 %v370, %v2147
    %v2149 = vsub.f32 %v2135, %v2148
    %v2150 = vsub.f32 %v2149, %v1896
    %v2151 = vmul.f32 %v1897, 2.0
    %v2152 = vmul.f32 %v2134, %v375
    %v2153 = vsub.f32 %v2151, %v2152
    %v2154 = vsub.f32 %v2153, %v1897
    %2155 = vmatprep.subr.mxu0 0.0
    %2156 = vmatpush1.msra.mxu0 %v2150
    %2157 = vmatprep.subr.mxu0 0.0
    %2158 = vmatpush1.msra.mxu0 0.0
    %2159 = vmatprep.subr.mxu0 0.0
    %2160 = vmatpush1.msra.mxu0 0.0
    %2161 = vmatprep.subr.mxu0 0.0
    %2162 = vmatpush1.msra.mxu0 0.0
    %2163 = vmatprep.subr.mxu0 0.0
    %2164 = vmatpush1.msra.mxu0 0.0
    %2165 = vmatprep.subr.mxu0 0.0
    %2166 = vmatpush1.msra.mxu0 0.0
    %2167 = vmatprep.subr.mxu0 0.0
    %2168 = vmatpush1.msra.mxu0 0.0
    %2169 = vmatprep.subr.mxu0 0.0
    %2170 = vmatpush1.msra.mxu0 0.0
    %2171 = vmatprep.subr.mxu0 0.0
    %2172 = vmatpush1.msra.mxu0 0.0
    %2173 = vmatprep.subr.mxu0 0.0
    %2174 = vmatpush1.msra.mxu0 0.0
    %2175 = vmatprep.subr.mxu0 0.0
    %2176 = vmatpush1.msra.mxu0 0.0
    %2177 = vmatprep.subr.mxu0 0.0
    %2178 = vmatpush1.msra.mxu0 0.0
    %2179 = vmatprep.subr.mxu0 0.0
    %2180 = vmatpush1.msra.mxu0 0.0
    %2181 = vmatprep.subr.mxu0 0.0
    %2182 = vmatpush1.msra.mxu0 0.0
    %2183 = vmatprep.subr.mxu0 0.0
    %2184 = vmatpush1.msra.mxu0 0.0
    %2185 = vmatprep.subr.mxu0 0.0
    %2186 = vmatpush1.msra.mxu0 0.0
    %2187 = vmatprep.subr.mxu0 0.0
    %2188 = vmatpush1.msra.mxu0 0.0
    %2189 = vmatprep.subr.mxu0 0.0
    %2190 = vmatpush1.msra.mxu0 0.0
    %2191 = vmatprep.subr.mxu0 0.0
    %2192 = vmatpush1.msra.mxu0 0.0
    %2193 = vmatprep.subr.mxu0 0.0
    %2194 = vmatpush1.msra.mxu0 0.0
    %2195 = vmatprep.subr.mxu0 0.0
    %2196 = vmatpush1.msra.mxu0 0.0
    %2197 = vmatprep.subr.mxu0 0.0
    %2198 = vmatpush1.msra.mxu0 0.0
    %2199 = vmatprep.subr.mxu0 0.0
    %2200 = vmatpush1.msra.mxu0 0.0
    %2201 = vmatprep.subr.mxu0 0.0
    %2202 = vmatpush1.msra.mxu0 0.0
    %2203 = vmatprep.subr.mxu0 0.0
    %2204 = vmatpush1.msra.mxu0 0.0
    %2205 = vmatprep.subr.mxu0 0.0
    %2206 = vmatpush1.msra.mxu0 0.0
    %2207 = vmatprep.subr.mxu0 0.0
    %2208 = vmatpush1.msra.mxu0 0.0
    %2209 = vmatprep.subr.mxu0 0.0
    %2210 = vmatpush1.msra.mxu0 0.0
    %2211 = vmatprep.subr.mxu0 0.0
    %2212 = vmatpush1.msra.mxu0 0.0
    %2213 = vmatprep.subr.mxu0 0.0
    %2214 = vmatpush1.msra.mxu0 0.0
    %2215 = vmatprep.subr.mxu0 0.0
    %2216 = vmatpush1.msra.mxu0 0.0
    %2217 = vmatprep.subr.mxu0 0.0
    %2218 = vmatpush1.msra.mxu0 0.0
    %2219 = vmatprep.mubr.f32.mxu0 0.0
    %2220 = vmatmul.mubr.f32.gmra.mrb[0].mxu0 %v125
    %v2221 = vpop.f32.mrb[0].mxu0
    %v2222 = vadd.f32 0.0, %v2221
    %v2223 = vpop.f32.mrb[0].mxu0
    %2224 = vdwg.mxu0
    %v2225 = vadd.f32 %v2133, %v2222
    %2227 = vrot.lane.b32.xlu0 %v2154, 1
    %v2228 = vpop.permute.xlu0 %2227
    %2230 = vmatprep.subr.mxu0 0.0
    %2231 = vmatpush1.msra.mxu0 %v2228
    %2232 = vmatprep.subr.mxu0 0.0
    %2233 = vmatpush1.msra.mxu0 0.0
    %2234 = vmatprep.subr.mxu0 0.0
    %2235 = vmatpush1.msra.mxu0 0.0
    %2236 = vmatprep.subr.mxu0 0.0
    %2237 = vmatpush1.msra.mxu0 0.0
    %2238 = vmatprep.subr.mxu0 0.0
    %2239 = vmatpush1.msra.mxu0 0.0
    %2240 = vmatprep.subr.mxu0 0.0
    %2241 = vmatpush1.msra.mxu0 0.0
    %2242 = vmatprep.subr.mxu0 0.0
    %2243 = vmatpush1.msra.mxu0 0.0
    %2244 = vmatprep.subr.mxu0 0.0
    %2245 = vmatpush1.msra.mxu0 0.0
    %2246 = vmatprep.subr.mxu0 0.0
    %2247 = vmatpush1.msra.mxu0 0.0
    %2248 = vmatprep.subr.mxu0 0.0
    %2249 = vmatpush1.msra.mxu0 0.0
    %2250 = vmatprep.subr.mxu0 0.0
    %2251 = vmatpush1.msra.mxu0 0.0
    %2252 = vmatprep.subr.mxu0 0.0
    %2253 = vmatpush1.msra.mxu0 0.0
    %2254 = vmatprep.subr.mxu0 0.0
    %2255 = vmatpush1.msra.mxu0 0.0
    %2256 = vmatprep.subr.mxu0 0.0
    %2257 = vmatpush1.msra.mxu0 0.0
    %2258 = vmatprep.subr.mxu0 0.0
    %2259 = vmatpush1.msra.mxu0 0.0
    %2260 = vmatprep.subr.mxu0 0.0
    %2261 = vmatpush1.msra.mxu0 0.0
    %2262 = vmatprep.subr.mxu0 0.0
    %2263 = vmatpush1.msra.mxu0 0.0
    %2264 = vmatprep.subr.mxu0 0.0
    %2265 = vmatpush1.msra.mxu0 0.0
    %2266 = vmatprep.subr.mxu0 0.0
    %2267 = vmatpush1.msra.mxu0 0.0
    %2268 = vmatprep.subr.mxu0 0.0
    %2269 = vmatpush1.msra.mxu0 0.0
    %2270 = vmatprep.subr.mxu0 0.0
    %2271 = vmatpush1.msra.mxu0 0.0
    %2272 = vmatprep.subr.mxu0 0.0
    %2273 = vmatpush1.msra.mxu0 0.0
    %2274 = vmatprep.subr.mxu0 0.0
    %2275 = vmatpush1.msra.mxu0 0.0
    %2276 = vmatprep.subr.mxu0 0.0
    %2277 = vmatpush1.msra.mxu0 0.0
    %2278 = vmatprep.subr.mxu0 0.0
    %2279 = vmatpush1.msra.mxu0 0.0
    %2280 = vmatprep.subr.mxu0 0.0
    %2281 = vmatpush1.msra.mxu0 0.0
    %2282 = vmatprep.subr.mxu0 0.0
    %2283 = vmatpush1.msra.mxu0 0.0
    %2284 = vmatprep.subr.mxu0 0.0
    %2285 = vmatpush1.msra.mxu0 0.0
    %2286 = vmatprep.subr.mxu0 0.0
    %2287 = vmatpush1.msra.mxu0 0.0
    %2288 = vmatprep.subr.mxu0 0.0
    %2289 = vmatpush1.msra.mxu0 0.0
    %2290 = vmatprep.subr.mxu0 0.0
    %2291 = vmatpush1.msra.mxu0 0.0
    %2292 = vmatprep.subr.mxu0 0.0
    %2293 = vmatpush1.msra.mxu0 0.0
    %2294 = vmatprep.mubr.f32.mxu0 0.0
    %2295 = vmatmul.mubr.f32.gmra.mrb[0].mxu0 %v125
    %v2296 = vpop.f32.mrb[0].mxu0
    %v2297 = vadd.f32 0.0, %v2296
    %v2298 = vpop.f32.mrb[0].mxu0
    %2299 = vdwg.mxu0
    %2301 = vrot.lane.b32.xlu0 %v2297, 127
    %v2302 = vpop.permute.xlu0 %2301
    %v2304 = vadd.f32 %v2134, %v2302
    %2305 = vmatprep.subr.mxu0 0.0
    %2306 = vmatpush1.msra.mxu0 %v2150
    %2307 = vmatprep.subr.mxu0 0.0
    %2308 = vmatpush1.msra.mxu0 0.0
    %2309 = vmatprep.subr.mxu0 0.0
    %2310 = vmatpush1.msra.mxu0 0.0
    %2311 = vmatprep.subr.mxu0 0.0
    %2312 = vmatpush1.msra.mxu0 0.0
    %2313 = vmatprep.subr.mxu0 0.0
    %2314 = vmatpush1.msra.mxu0 0.0
    %2315 = vmatprep.subr.mxu0 0.0
    %2316 = vmatpush1.msra.mxu0 0.0
    %2317 = vmatprep.subr.mxu0 0.0
    %2318 = vmatpush1.msra.mxu0 0.0
    %2319 = vmatprep.subr.mxu0 0.0
    %2320 = vmatpush1.msra.mxu0 0.0
    %2321 = vmatprep.subr.mxu0 0.0
    %2322 = vmatpush1.msra.mxu0 0.0
    %2323 = vmatprep.subr.mxu0 0.0
    %2324 = vmatpush1.msra.mxu0 0.0
    %2325 = vmatprep.subr.mxu0 0.0
    %2326 = vmatpush1.msra.mxu0 0.0
    %2327 = vmatprep.subr.mxu0 0.0
    %2328 = vmatpush1.msra.mxu0 0.0
    %2329 = vmatprep.subr.mxu0 0.0
    %2330 = vmatpush1.msra.mxu0 0.0
    %2331 = vmatprep.subr.mxu0 0.0
    %2332 = vmatpush1.msra.mxu0 0.0
    %2333 = vmatprep.subr.mxu0 0.0
    %2334 = vmatpush1.msra.mxu0 0.0
    %2335 = vmatprep.subr.mxu0 0.0
    %2336 = vmatpush1.msra.mxu0 0.0
    %2337 = vmatprep.subr.mxu0 0.0
    %2338 = vmatpush1.msra.mxu0 0.0
    %2339 = vmatprep.subr.mxu0 0.0
    %2340 = vmatpush1.msra.mxu0 0.0
    %2341 = vmatprep.subr.mxu0 0.0
    %2342 = vmatpush1.msra.mxu0 0.0
    %2343 = vmatprep.subr.mxu0 0.0
    %2344 = vmatpush1.msra.mxu0 0.0
    %2345 = vmatprep.subr.mxu0 0.0
    %2346 = vmatpush1.msra.mxu0 0.0
    %2347 = vmatprep.subr.mxu0 0.0
    %2348 = vmatpush1.msra.mxu0 0.0
    %2349 = vmatprep.subr.mxu0 0.0
    %2350 = vmatpush1.msra.mxu0 0.0
    %2351 = vmatprep.subr.mxu0 0.0
    %2352 = vmatpush1.msra.mxu0 0.0
    %2353 = vmatprep.subr.mxu0 0.0
    %2354 = vmatpush1.msra.mxu0 0.0
    %2355 = vmatprep.subr.mxu0 0.0
    %2356 = vmatpush1.msra.mxu0 0.0
    %2357 = vmatprep.subr.mxu0 0.0
    %2358 = vmatpush1.msra.mxu0 0.0
    %2359 = vmatprep.subr.mxu0 0.0
    %2360 = vmatpush1.msra.mxu0 0.0
    %2361 = vmatprep.subr.mxu0 0.0
    %2362 = vmatpush1.msra.mxu0 0.0
    %2363 = vmatprep.subr.mxu0 0.0
    %2364 = vmatpush1.msra.mxu0 0.0
    %2365 = vmatprep.subr.mxu0 0.0
    %2366 = vmatpush1.msra.mxu0 0.0
    %2367 = vmatprep.subr.mxu0 0.0
    %2368 = vmatpush1.msra.mxu0 0.0
    %2369 = vmatprep.mubr.f32.mxu0 0.0
    %2370 = vmatmul.mubr.f32.gmra.mrb[0].mxu0 %v199
    %v2371 = vpop.f32.mrb[0].mxu0
    %v2372 = vadd.f32 0.0, %v2371
    %v2373 = vpop.f32.mrb[0].mxu0
    %2374 = vdwg.mxu0
    %2375 = vmatprep.subr.mxu0 0.0
    %2376 = vmatpush1.msra.mxu0 %v2228
    %2377 = vmatprep.subr.mxu0 0.0
    %2378 = vmatpush1.msra.mxu0 0.0
    %2379 = vmatprep.subr.mxu0 0.0
    %2380 = vmatpush1.msra.mxu0 0.0
    %2381 = vmatprep.subr.mxu0 0.0
    %2382 = vmatpush1.msra.mxu0 0.0
    %2383 = vmatprep.subr.mxu0 0.0
    %2384 = vmatpush1.msra.mxu0 0.0
    %2385 = vmatprep.subr.mxu0 0.0
    %2386 = vmatpush1.msra.mxu0 0.0
    %2387 = vmatprep.subr.mxu0 0.0
    %2388 = vmatpush1.msra.mxu0 0.0
    %2389 = vmatprep.subr.mxu0 0.0
    %2390 = vmatpush1.msra.mxu0 0.0
    %2391 = vmatprep.subr.mxu0 0.0
    %2392 = vmatpush1.msra.mxu0 0.0
    %2393 = vmatprep.subr.mxu0 0.0
    %2394 = vmatpush1.msra.mxu0 0.0
    %2395 = vmatprep.subr.mxu0 0.0
    %2396 = vmatpush1.msra.mxu0 0.0
    %2397 = vmatprep.subr.mxu0 0.0
    %2398 = vmatpush1.msra.mxu0 0.0
    %2399 = vmatprep.subr.mxu0 0.0
    %2400 = vmatpush1.msra.mxu0 0.0
    %2401 = vmatprep.subr.mxu0 0.0
    %2402 = vmatpush1.msra.mxu0 0.0
    %2403 = vmatprep.subr.mxu0 0.0
    %2404 = vmatpush1.msra.mxu0 0.0
    %2405 = vmatprep.subr.mxu0 0.0
    %2406 = vmatpush1.msra.mxu0 0.0
    %2407 = vmatprep.subr.mxu0 0.0
    %2408 = vmatpush1.msra.mxu0 0.0
    %2409 = vmatprep.subr.mxu0 0.0
    %2410 = vmatpush1.msra.mxu0 0.0
    %2411 = vmatprep.subr.mxu0 0.0
    %2412 = vmatpush1.msra.mxu0 0.0
    %2413 = vmatprep.subr.mxu0 0.0
    %2414 = vmatpush1.msra.mxu0 0.0
    %2415 = vmatprep.subr.mxu0 0.0
    %2416 = vmatpush1.msra.mxu0 0.0
    %2417 = vmatprep.subr.mxu0 0.0
    %2418 = vmatpush1.msra.mxu0 0.0
    %2419 = vmatprep.subr.mxu0 0.0
    %2420 = vmatpush1.msra.mxu0 0.0
    %2421 = vmatprep.subr.mxu0 0.0
    %2422 = vmatpush1.msra.mxu0 0.0
    %2423 = vmatprep.subr.mxu0 0.0
    %2424 = vmatpush1.msra.mxu0 0.0
    %2425 = vmatprep.subr.mxu0 0.0
    %2426 = vmatpush1.msra.mxu0 0.0
    %2427 = vmatprep.subr.mxu0 0.0
    %2428 = vmatpush1.msra.mxu0 0.0
    %2429 = vmatprep.subr.mxu0 0.0
    %2430 = vmatpush1.msra.mxu0 0.0
    %2431 = vmatprep.subr.mxu0 0.0
    %2432 = vmatpush1.msra.mxu0 0.0
    %2433 = vmatprep.subr.mxu0 0.0
    %2434 = vmatpush1.msra.mxu0 0.0
    %2435 = vmatprep.subr.mxu0 0.0
    %2436 = vmatpush1.msra.mxu0 0.0
    %2437 = vmatprep.subr.mxu0 0.0
    %2438 = vmatpush1.msra.mxu0 0.0
    %2439 = vmatprep.mubr.f32.mxu0 0.0
    %2440 = vmatmul.mubr.f32.gmra.mrb[0].mxu0 %v273
    %v2441 = vpop.f32.mrb[0].mxu0
    %v2442 = vadd.f32 0.0, %v2441
    %v2443 = vpop.f32.mrb[0].mxu0
    %2444 = vdwg.mxu0
    %2446 = vset.pattern.permute.xlu0 0
    %2447 = vperm.xlu0 %2446, %v2225
    %v2448 = vpop.permute.xlu0 %2447
    %v2450 = vsel %vm90, %v2448, %v2133
    %v2451 = vsel %vm91, %v2448, %v2134
    %2453 = vset.pattern.permute.xlu0 127
    %2454 = vperm.xlu0 %2453, %v2304
    %v2455 = vpop.permute.xlu0 %2454
    %v2457 = vsel %vm117, %v2455, %v2450
    %v2458 = vsel %vm118, %v2455, %v2451
    %2460 = vrot.lane.b32.xlu0 %v2372, 1
    %v2461 = vpop.permute.xlu0 %2460
    %v2463 = vadd.f32 %v2133, %v2461
    %2465 = vset.pattern.permute.xlu0 1
    %2466 = vperm.xlu0 %2465, %v2463
    %v2467 = vpop.permute.xlu0 %2466
    %v2469 = vsel %vm683, %v2467, %v2457
    %v2470 = vsel %vm684, %v2467, %v2458
    %2472 = vrot.lane.b32.xlu0 %v2442, 126
    %v2473 = vpop.permute.xlu0 %2472
    %v2475 = vadd.f32 %v2134, %v2473
    %2477 = vset.pattern.permute.xlu0 126
    %2478 = vperm.xlu0 %2477, %v2475
    %v2479 = vpop.permute.xlu0 %2478
    %v2481 = vsel %vm697, %v2479, %v2469
    %v2482 = vsel %vm698, %v2479, %v2470
    %s2483 = scalar_lea.vmem [#allocation10], 48
    %2484 = vst [vmem:[%s2483] sm:$0xff] %v2481
    %2485 = vst [vmem:[%s2483 + $0x8] sm:$0xff] %v2482
    // Predicated region
    $region34: #{_lambda_.1} parent=1 // pred_check
      _
    $region35: #{_lambda_.1} parent=1 // pred_check_branch
      %2487 = sbr.rel (0) target = $region37
    $region36: #{_lambda_.1} parent=1 // pred_region
      %s2489 = ssub.s32 1024, 1024
      %2490 = vsyncadd [#allocation4], %s2489
      %s2491 = sshll.u32 [#allocation10], 4
      %s2492 = int_to_ptr.vmem [resolvable:$true] %s2491
      %2497 = dma.vmem_to_hbm [thread:$0]  %s2492, 1024, %s4, [#allocation4], 256, 256, 16
    $region37: #{_lambda_.1} parent=1 // pred_fallthru
      _
    // Predicated region
    $region38: #{_lambda_.1} parent=1 // pred_check
      _
    $region39: #{_lambda_.1} parent=1 // pred_check_branch
      %2499 = sbr.rel (0) target = $region41
    $region40: #{_lambda_.1} parent=1 // pred_region
      %2500 = dma.done [#allocation4], 1024
    $region41: #{_lambda_.1} parent=1 // pred_fallthru
      _
    %2501 = vsyncpa [#allocation3], 1
    %2502 = vsyncpa [#allocation8], 1
    %2503 = vsyncpa [#allocation4], 1
    %2504 = vsyncpa [#allocation5], 1

</llo_original>
